<compile_context>
chip_gen: v5e
topology: v5e:2x2
jax: 0.10.0
libtpu: 0.0.40
codegen_flags: <defaults>
</compile_context>

<pallas_src>
import functools
import math

import jax
import jax.numpy as jnp
from jax import lax
from jax.experimental import pallas as pl
from jax.experimental.pallas import tpu as pltpu


# ---------------------------------------------------------------------------
# In-kernel math helpers (traced into the kernels; also reused by the JAX reference)
# ---------------------------------------------------------------------------
def _layernorm(x, gamma, beta, eps=1e-5):
    # PyTorch nn.LayerNorm: biased variance, eps inside the sqrt.  f32 math.
    mu = jnp.mean(x, axis=-1, keepdims=True)
    var = jnp.mean((x - mu) ** 2, axis=-1, keepdims=True)
    return (x - mu) * lax.rsqrt(var + eps) * gamma + beta


def _gelu_exact(x):
    # PyTorch nn.GELU() default (exact erf form).
    return 0.5 * x * (1.0 + lax.erf(x * (1.0 / math.sqrt(2.0))))


def _dot_nt(a, b):
    # a: (M, d), b: (N, d) -> (M, N), contracting last dims (no explicit transpose).
    return lax.dot_general(a, b, (((1,), (1,)), ((), ())),
                           preferred_element_type=jnp.float32)


def _weight_spec(shape, single_buffer=True):
    """BlockSpec for a grid-invariant input: constant index_map, single-buffered."""
    idx_map = lambda *_: (0,) * len(shape)
    if single_buffer:
        try:
            return pl.BlockSpec(shape, idx_map, pipeline_mode=pl.Buffered(1))
        except (TypeError, AttributeError):   # older JAX: no pipeline_mode / Buffered
            pass
    return pl.BlockSpec(shape, idx_map)


def _pick_tile(m, target):
    """Largest tile <= target that divides m (multiple of 8 for sublane alignment).

    Targets default to tq=256 / tk=512 (multiples of 256 fill the v6e/v7x MXU; on v5e
    128-multiples already saturate the 4x128x128 MXU and smaller tiles save VMEM)."""
    if m <= target:
        return m
    for t in range(target, 0, -1):
        if m % t == 0 and t % 8 == 0:
            return t
    return m


# ---------------------------------------------------------------------------
# Kernel 1: LayerNorm + QKV projection, emitted per head.
# Grid: (batch, token tiles).
# ---------------------------------------------------------------------------
def _qkv_kernel(feat_ref, ga_ref, be_ref, wq_ref, wk_ref, wv_ref,
                q_ref, k_ref, v_ref, *, heads, dim_head, scale):
    x = feat_ref[0].astype(jnp.float32)                                  # (tm, D)
    nx = _layernorm(x, ga_ref[...], be_ref[...]).astype(jnp.bfloat16)
    # Three separate (D, inner) matmuls: no (tm, 3*inner) f32 slab, no unaligned slices.
    q = (jnp.dot(nx, wq_ref[...], preferred_element_type=jnp.float32)
         * scale).astype(jnp.bfloat16)                                   # scale folded into q
    k = jnp.dot(nx, wk_ref[...], preferred_element_type=jnp.float32).astype(jnp.bfloat16)
    v = jnp.dot(nx, wv_ref[...], preferred_element_type=jnp.float32).astype(jnp.bfloat16)
    # Static per-head de-interleave: one lane-slice store per head, once per token tile.
    for h in range(heads):
        sl = slice(h * dim_head, (h + 1) * dim_head)
        q_ref[0, h] = q[:, sl]
        k_ref[0, h] = k[:, sl]
        v_ref[0, h] = v[:, sl]


# ---------------------------------------------------------------------------
# Kernel 2: flash-style attention (+ spatial displacement) + out-proj + residual
#           + FeedForward + residual.
# Grid: (batch, query tiles, key tiles); key-tile axis is the ("arbitrary") reduction.
# ---------------------------------------------------------------------------
def _attn_ff_kernel(q_ref, k_ref, v_ref, xk_ref, xq_ref, feat_ref,
                    wo_ref, bo_ref, fg_ref, fb_ref, w1_ref, b1_ref, w2_ref, b2_ref,
                    out_ref,
                    m_scr, l_scr, acc_scr, vx_scr, o_scr,
                    *, heads, dim_head):
    ki = pl.program_id(2)
    nk = pl.num_programs(2)
    Dh = dim_head

    @pl.when(ki == 0)
    def _init():
        m_scr[...] = jnp.full(m_scr.shape, -jnp.inf, dtype=m_scr.dtype)
        l_scr[...] = jnp.zeros(l_scr.shape, dtype=l_scr.dtype)
        acc_scr[...] = jnp.zeros(acc_scr.shape, dtype=acc_scr.dtype)

    # Invariant half of the fused [V_h | xyz_sp] operand: written once per key tile,
    # not once per head (hoisted out of the head loop; no per-head concatenate).
    vx_scr[:, Dh:] = xk_ref[0]                                           # (tk, Dh) bf16

    def _head_step(h, carry):
        vx_scr[:, :Dh] = v_ref[0, h]                                     # (tk, Dh) bf16
        s = _dot_nt(q_ref[0, h], k_ref[0, h])                            # (tq, tk) f32
        m_prev = m_scr[h]                                                # (tq, 1)
        m_new = jnp.maximum(m_prev, jnp.max(s, axis=-1, keepdims=True))
        alpha = jnp.exp(m_prev - m_new)
        p = jnp.exp(s - m_new)
        l_scr[h] = alpha * l_scr[h] + jnp.sum(p, axis=-1, keepdims=True)
        # Fused attn @ [V_h | xyz_sp]: one (tq,tk)x(tk,2*Dh) MXU matmul per head.
        acc_scr[h] = alpha * acc_scr[h] + jnp.dot(
            p.astype(jnp.bfloat16), vx_scr[...], preferred_element_type=jnp.float32)
        m_scr[h] = m_new
        return carry

    lax.fori_loop(0, heads, _head_step, 0)

    @pl.when(ki == nk - 1)
    def _finalize():
        xq = xq_ref[0].astype(jnp.float32)                               # (tq, Dh)
        o_scr[...] = jnp.zeros(o_scr.shape, dtype=o_scr.dtype)

        def _head_out(h, carry):
            # Exact reciprocal (once per query tile, outside the hot loop):
            # rowsum(attn) == 1, so displacement = attn@xyz_sp - xyz_sp matches the reference.
            inv_l = 1.0 / l_scr[h]                                       # (tq, 1)
            acc = acc_scr[h] * inv_l                                     # (tq, 2*Dh)
            out_h = acc[:, :Dh] + (acc[:, Dh:] - xq)                     # attn@V + displacement
            # out-projection accumulated per head: sum_h out_h @ W_out[h]  (no concat).
            o_scr[...] += jnp.dot(out_h.astype(jnp.bfloat16), wo_ref[h],
                                  preferred_element_type=jnp.float32)
            return carry

        lax.fori_loop(0, heads, _head_out, 0)

        x = feat_ref[0].astype(jnp.float32)                              # (tq, D) residual input
        x = _gelu_exact(o_scr[...] + bo_ref[...]) + x                    # to_out: Linear+GELU, residual

        # -------- FeedForward --------
        nx2 = _layernorm(x, fg_ref[...], fb_ref[...]).astype(jnp.bfloat16)
        h1 = jnp.dot(nx2, w1_ref[...], preferred_element_type=jnp.float32) + b1_ref[...]
        h1 = _gelu_exact(h1).astype(jnp.bfloat16)
        o2 = jnp.dot(h1, w2_ref[...], preferred_element_type=jnp.float32) + b2_ref[...]
        out_ref[0] = (o2 + x).astype(out_ref.dtype)                      # FF residual


# ---------------------------------------------------------------------------
# Per-layer wrapper: two pallas_calls (QKV projection, then attention + FF).
# ---------------------------------------------------------------------------
def transformer_layer(xyz_sp, feat, attn_p, ff_p, *, heads, dim_head,
                      tile_m=256, tile_q=256, tile_k=512, single_buffer_weights=True):
    B, M, D = feat.shape
    Dh = dim_head
    inner = heads * dim_head
    mlp_h = ff_p["w1"].shape[1]
    scale = dim_head ** (-0.5)

    tm = _pick_tile(M, tile_m)
    tq = _pick_tile(M, tile_q)
    tk = _pick_tile(M, tile_k)
    nq, nk = M // tq, M // tk

    ws = functools.partial(_weight_spec, single_buffer=single_buffer_weights)

    # Explicit scoped-VMEM budget (v5e default is 16 MiB, v6e/v7x 32 MiB); never request
    # more than v7x's 64 MiB physical VMEM per TensorCore.
    _rup = lambda n, m: -(-n // m) * m
    bf2, f4 = 2, 4
    step_bytes = (
        2 * (heads * tq * Dh * bf2 + 2 * heads * tk * Dh * bf2               # q, k, v tiles
             + (tk + tq) * _rup(Dh, 128) * bf2                               # xyz_sp tiles
             + 2 * tq * D * bf2)                                             # features + out tiles
        + (inner * D + D * mlp_h + mlp_h * D + 3 * D * inner) * bf2          # weights
        + (7 * D + mlp_h) * f4                                               # LN params + biases
        + 2 * heads * tq * 128 * f4                                          # m, l scratch
        + heads * tq * _rup(2 * Dh, 128) * f4                                # acc scratch
        + tk * _rup(2 * Dh, 128) * bf2                                       # packed [V|xyz]
        + tq * _rup(D, 128) * f4                                             # out-proj accumulator
        + 2 * (tm * D * bf2 + 3 * heads * tm * Dh * bf2)                     # QKV kernel tiles
    )
    vmem_bytes = int(min(64 << 20, max(32 << 20, 2 * step_bytes)))

    # -------- pass 1: LayerNorm + QKV projection, per-head layout --------
    qkv_call = pl.pallas_call(
        functools.partial(_qkv_kernel, heads=heads, dim_head=dim_head, scale=scale),
        out_shape=[jax.ShapeDtypeStruct((B, heads, M, Dh), jnp.bfloat16)] * 3,
        grid_spec=pltpu.PrefetchScalarGridSpec(
            num_scalar_prefetch=0,
            grid=(B, M // tm),
            in_specs=[
                pl.BlockSpec((1, tm, D), lambda b, i: (b, i, 0)),            # features (bf16)
                ws((1, D)), ws((1, D)),                                      # attn LN gamma/beta
                ws((D, inner)), ws((D, inner)), ws((D, inner)),              # w_q, w_k, w_v (bf16)
            ],
            out_specs=[pl.BlockSpec((1, heads, tm, Dh), lambda b, i: (b, 0, i, 0))] * 3,
        ),
        compiler_params=pltpu.CompilerParams(
            dimension_semantics=("parallel", "parallel"),
            vmem_limit_bytes=vmem_bytes),
    )
    q, k, v = qkv_call(feat, attn_p["ln_g"], attn_p["ln_b"],
                       attn_p["w_q"], attn_p["w_k"], attn_p["w_v"])

    # -------- pass 2: flash attention + out-proj + residual + FeedForward --------
    w_out3 = attn_p["w_out"].reshape(heads, Dh, D)   # per-head out-projection blocks

    attn_ff_call = pl.pallas_call(
        functools.partial(_attn_ff_kernel, heads=heads, dim_head=dim_head),
        out_shape=jax.ShapeDtypeStruct((B, M, D), feat.dtype),
        grid_spec=pltpu.PrefetchScalarGridSpec(
            num_scalar_prefetch=0,
            grid=(B, nq, nk),
            in_specs=[
                pl.BlockSpec((1, heads, tq, Dh), lambda b, qi, ki: (b, 0, qi, 0)),  # q
                pl.BlockSpec((1, heads, tk, Dh), lambda b, qi, ki: (b, 0, ki, 0)),  # k
                pl.BlockSpec((1, heads, tk, Dh), lambda b, qi, ki: (b, 0, ki, 0)),  # v
                pl.BlockSpec((1, tk, Dh), lambda b, qi, ki: (b, ki, 0)),            # xyz_sp (keys)
                pl.BlockSpec((1, tq, Dh), lambda b, qi, ki: (b, qi, 0)),            # xyz_sp (queries)
                pl.BlockSpec((1, tq, D), lambda b, qi, ki: (b, qi, 0)),             # features (residual)
                ws((heads, Dh, D)), ws((1, D)),                                     # w_out, b_out
                ws((1, D)), ws((1, D)),                                             # ff LN gamma/beta
                ws((D, mlp_h)), ws((1, mlp_h)), ws((mlp_h, D)), ws((1, D)),         # w1, b1, w2, b2
            ],
            out_specs=pl.BlockSpec((1, tq, D), lambda b, qi, ki: (b, qi, 0)),
            scratch_shapes=[
                pltpu.VMEM((heads, tq, 1), jnp.float32),       # online-softmax m
                pltpu.VMEM((heads, tq, 1), jnp.float32),       # online-softmax l
                pltpu.VMEM((heads, tq, 2 * Dh), jnp.float32),  # acc = [attn@V | attn@xyz_sp]
                pltpu.VMEM((tk, 2 * Dh), jnp.bfloat16),        # packed [V_h | xyz_sp] operand
                pltpu.VMEM((tq, D), jnp.float32),              # out-projection accumulator
            ],
        ),
        compiler_params=pltpu.CompilerParams(
            dimension_semantics=("parallel", "parallel", "arbitrary"),
            vmem_limit_bytes=vmem_bytes),
    )
    return attn_ff_call(q, k, v, xyz_sp, xyz_sp, feat,
                        w_out3, attn_p["b_out"],
                        ff_p["ln_g"], ff_p["ln_b"],
                        ff_p["w1"], ff_p["b1"], ff_p["w2"], ff_p["b2"])


# ---------------------------------------------------------------------------
# Parameter init + full Transformer forward
# ---------------------------------------------------------------------------
def init_transformer_params(key, dim, depth, heads, dim_head, mlp_dim):
    inner = heads * dim_head
    layers = []
    for _ in range(depth):
        keys = jax.random.split(key, 9)
        key = keys[0]
        bf = lambda a: a.astype(jnp.bfloat16)
        attn_p = {
            "ln_g": jnp.ones((1, dim), jnp.float32),
            "ln_b": jnp.zeros((1, dim), jnp.float32),
            # q/k/v as separate (dim, inner) matrices (avoids a fused (dim, 3*inner) weight
            # and the unaligned in-kernel lane slices of a 3*inner intermediate).
            "w_q": bf(0.05 * jax.random.normal(keys[1], (dim, inner), jnp.float32)),
            "w_k": bf(0.05 * jax.random.normal(keys[2], (dim, inner), jnp.float32)),
            "w_v": bf(0.05 * jax.random.normal(keys[3], (dim, inner), jnp.float32)),
            "w_sp": 0.05 * jax.random.normal(keys[4], (3, dim_head), jnp.float32),
            "w_out": bf(0.05 * jax.random.normal(keys[5], (inner, dim), jnp.float32)),
            "b_out": 0.01 * jax.random.normal(keys[6], (1, dim), jnp.float32),
        }
        ff_p = {
            "ln_g": jnp.ones((1, dim), jnp.float32),
            "ln_b": jnp.zeros((1, dim), jnp.float32),
            "w1": bf(0.05 * jax.random.normal(keys[7], (dim, mlp_dim), jnp.float32)),
            "b1": jnp.zeros((1, mlp_dim), jnp.float32),
            "w2": bf(0.05 * jax.random.normal(keys[8], (mlp_dim, dim), jnp.float32)),
            "b2": jnp.zeros((1, dim), jnp.float32),
        }
        layers.append((attn_p, ff_p))
    return layers


def transformer_forward(xyzs, features, layers, *, heads, dim_head,
                        single_buffer_weights=True):
    # xyzs: (B, L, N, 3), features: (B, L, N, D)
    B, L, N, D = features.shape
    M = L * N
    xyz_flat = xyzs.reshape(B, M, 3).astype(jnp.float32)
    # Inter-layer activations kept as bf16 in HBM (halves the dominant (B, M, D) traffic);
    # f32 math is restored inside the kernels.
    feat = features.reshape(B, M, D).astype(jnp.bfloat16)
    for attn_p, ff_p in layers:
        # Tiny K=3 spatial projection hoisted out of the kernels (shared across heads),
        # passed to the attention kernel in bf16 (MXU operand + one subtraction only).
        xyz_sp = jnp.einsum("bmk,kd->bmd", xyz_flat, attn_p["w_sp"]).astype(jnp.bfloat16)
        feat = transformer_layer(xyz_sp, feat, attn_p, ff_p,
                                 heads=heads, dim_head=dim_head,
                                 single_buffer_weights=single_buffer_weights)
    return feat.reshape(B, L, N, D).astype(features.dtype)


# ---------------------------------------------------------------------------
# Pure-JAX f32 reference (same bf16 weights, f32 activations) for a sanity check.
# ---------------------------------------------------------------------------
def _reference_forward(xyzs, features, layers, *, heads, dim_head):
    B, L, N, D = features.shape
    M = L * N
    f32 = lambda a: a.astype(jnp.float32)
    x = features.reshape(B, M, D).astype(jnp.float32)
    xyz = xyzs.reshape(B, M, 3).astype(jnp.float32)
    scale = dim_head ** (-0.5)
    for attn_p, ff_p in layers:
        nx = _layernorm(x, f32(attn_p["ln_g"]), f32(attn_p["ln_b"]))
        q = (nx @ f32(attn_p["w_q"])) * scale
        k = nx @ f32(attn_p["w_k"])
        v = nx @ f32(attn_p["w_v"])
        xyz_sp = xyz @ f32(attn_p["w_sp"])
        outs = []
        for h in range(heads):
            sl = slice(h * dim_head, (h + 1) * dim_head)
            s = jnp.einsum("bid,bjd->bij", q[..., sl], k[..., sl])
            attn = jax.nn.softmax(s, axis=-1)
            ov = jnp.einsum("bij,bjd->bid", attn, v[..., sl])
            disp = jnp.einsum("bij,bjd->bid", attn, xyz_sp) - xyz_sp
            outs.append(ov + disp)
        o = jnp.concatenate(outs, axis=-1) @ f32(attn_p["w_out"]) + f32(attn_p["b_out"])
        x = _gelu_exact(o) + x
        nx2 = _layernorm(x, f32(ff_p["ln_g"]), f32(ff_p["ln_b"]))
        h1 = _gelu_exact(nx2 @ f32(ff_p["w1"]) + f32(ff_p["b1"]))
        x = h1 @ f32(ff_p["w2"]) + f32(ff_p["b2"]) + x
    return x.reshape(B, L, N, D)


if __name__ == "__main__":
    # Small shapes consistent with the module's forward (project_out == True here).
    B, L, N = 2, 2, 4          # tokens M = L*N = 8
    DIM, DEPTH, HEADS, DIM_HEAD, MLP_DIM = 32, 2, 2, 16, 64

    key = jax.random.PRNGKey(0)
    k_xyz, k_feat, k_par = jax.random.split(key, 3)
    xyzs = jax.random.normal(k_xyz, (B, L, N, 3), jnp.float32)
    features = jax.random.normal(k_feat, (B, L, N, DIM), jnp.float32)

    layers = init_transformer_params(k_par, DIM, DEPTH, HEADS, DIM_HEAD, MLP_DIM)

    def _run(single_buffer):
        o = transformer_forward(xyzs, features, layers, heads=HEADS, dim_head=DIM_HEAD,
                                single_buffer_weights=single_buffer)
        return jax.block_until_ready(o)

    try:
        out = _run(True)
    except Exception:
        # Fallback if this JAX build rejects single-buffered (pl.Buffered(1)) weight specs.
        out = _run(False)

    assert out.shape == (B, L, N, DIM)
    ref = _reference_forward(xyzs, features, layers, heads=HEADS, dim_head=DIM_HEAD)
    max_err = float(jnp.max(jnp.abs(out.astype(jnp.float32) - ref)))
    assert max_err < 0.1, f"kernel/reference mismatch: max abs err {max_err}"
    print("KERNEL_OK")
</pallas_src>

<mosaic_0001>
module attributes {stable_mosaic.version = 11 : i64} {
  func.func @_qkv_kernel(%arg0: i32, %arg1: i32, %arg2: memref<1x8x32xbf16, #tpu.memory_space<vmem>>, %arg3: memref<1x32xf32, #tpu.memory_space<vmem>>, %arg4: memref<1x32xf32, #tpu.memory_space<vmem>>, %arg5: memref<32x32xbf16, #tpu.memory_space<vmem>>, %arg6: memref<32x32xbf16, #tpu.memory_space<vmem>>, %arg7: memref<32x32xbf16, #tpu.memory_space<vmem>>, %arg8: memref<1x2x8x16xbf16, #tpu.memory_space<vmem>>, %arg9: memref<1x2x8x16xbf16, #tpu.memory_space<vmem>>, %arg10: memref<1x2x8x16xbf16, #tpu.memory_space<vmem>>) attributes {dimension_semantics = [#tpu.dimension_semantics<parallel>, #tpu.dimension_semantics<parallel>], iteration_bounds = array<i64: 2, 1>, scalar_prefetch = 0 : i64, scratch_operands = 0 : i64, tpu.core_type = #tpu.core_type<tc>, window_params = [{transform_indices = @transform_0, window_bounds = array<i64: 1, 8, 32>}, {pipeline_mode = #tpu.pipeline_mode<synchronous>, transform_indices = @transform_1, window_bounds = array<i64: 1, 32>}, {pipeline_mode = #tpu.pipeline_mode<synchronous>, transform_indices = @transform_2, window_bounds = array<i64: 1, 32>}, {pipeline_mode = #tpu.pipeline_mode<synchronous>, transform_indices = @transform_3, window_bounds = array<i64: 32, 32>}, {pipeline_mode = #tpu.pipeline_mode<synchronous>, transform_indices = @transform_4, window_bounds = array<i64: 32, 32>}, {pipeline_mode = #tpu.pipeline_mode<synchronous>, transform_indices = @transform_5, window_bounds = array<i64: 32, 32>}, {transform_indices = @transform_6, window_bounds = array<i64: 1, 2, 8, 16>}, {transform_indices = @transform_7, window_bounds = array<i64: 1, 2, 8, 16>}, {transform_indices = @transform_8, window_bounds = array<i64: 1, 2, 8, 16>}]} {
    %c0 = arith.constant 0 : index
    %c0_0 = arith.constant 0 : index
    %c0_1 = arith.constant 0 : index
    %0 = vector.load %arg2[%c0, %c0_0, %c0_1] : memref<1x8x32xbf16, #tpu.memory_space<vmem>>, vector<1x8x32xbf16>
    %1 = vector.shape_cast %0 : vector<1x8x32xbf16> to vector<8x32xbf16>
    %2 = arith.extf %1 : vector<8x32xbf16> to vector<8x32xf32>
    %c0_2 = arith.constant 0 : index
    %c0_3 = arith.constant 0 : index
    %3 = vector.load %arg3[%c0_2, %c0_3] : memref<1x32xf32, #tpu.memory_space<vmem>>, vector<1x32xf32>
    %c0_4 = arith.constant 0 : index
    %c0_5 = arith.constant 0 : index
    %4 = vector.load %arg4[%c0_4, %c0_5] : memref<1x32xf32, #tpu.memory_space<vmem>>, vector<1x32xf32>
    %cst = arith.constant dense<0.000000e+00> : vector<8xf32>
    %5 = vector.multi_reduction <add>, %2, %cst [1] : vector<8x32xf32> to vector<8xf32>
    %6 = vector.shape_cast %5 : vector<8xf32> to vector<8x1xf32>
    %cst_6 = arith.constant 3.200000e+01 : f32
    %7 = vector.broadcast %cst_6 : f32 to vector<8x1xf32>
    %8 = arith.divf %6, %7 : vector<8x1xf32>
    %9 = vector.broadcast %8 : vector<8x1xf32> to vector<8x32xf32>
    %10 = arith.subf %2, %9 : vector<8x32xf32>
    %11 = arith.mulf %10, %10 : vector<8x32xf32>
    %cst_7 = arith.constant dense<0.000000e+00> : vector<8xf32>
    %12 = vector.multi_reduction <add>, %11, %cst_7 [1] : vector<8x32xf32> to vector<8xf32>
    %13 = vector.shape_cast %12 : vector<8xf32> to vector<8x1xf32>
    %cst_8 = arith.constant 3.200000e+01 : f32
    %14 = vector.broadcast %cst_8 : f32 to vector<8x1xf32>
    %15 = arith.divf %13, %14 : vector<8x1xf32>
    %16 = vector.broadcast %8 : vector<8x1xf32> to vector<8x32xf32>
    %17 = arith.subf %2, %16 : vector<8x32xf32>
    %cst_9 = arith.constant 9.99999974E-6 : f32
    %18 = vector.broadcast %cst_9 : f32 to vector<8x1xf32>
    %19 = arith.addf %15, %18 : vector<8x1xf32>
    %20 = math.rsqrt %19 : vector<8x1xf32>
    %21 = vector.broadcast %20 : vector<8x1xf32> to vector<8x32xf32>
    %22 = arith.mulf %17, %21 : vector<8x32xf32>
    %23 = vector.broadcast %3 : vector<1x32xf32> to vector<8x32xf32>
    %24 = arith.mulf %22, %23 : vector<8x32xf32>
    %25 = vector.broadcast %4 : vector<1x32xf32> to vector<8x32xf32>
    %26 = arith.addf %24, %25 : vector<8x32xf32>
    %27 = arith.truncf %26 : vector<8x32xf32> to vector<8x32xbf16>
    %c0_10 = arith.constant 0 : index
    %c0_11 = arith.constant 0 : index
    %28 = vector.load %arg5[%c0_10, %c0_11] : memref<32x32xbf16, #tpu.memory_space<vmem>>, vector<32x32xbf16>
    %cst_12 = arith.constant dense<0.000000e+00> : vector<8x32xf32>
    %29 = tpu.matmul %27, %28, %cst_12 {dimension_numbers = #tpu.dot_dimension_numbers<[1], [0], [0], [1], [0, 0, 1, 1], [], []>} : vector<8x32xbf16>, vector<32x32xbf16>, vector<8x32xf32> -> vector<8x32xf32>
    %cst_13 = arith.constant 2.500000e-01 : f32
    %30 = vector.broadcast %cst_13 : f32 to vector<8x32xf32>
    %31 = arith.mulf %29, %30 : vector<8x32xf32>
    %32 = arith.truncf %31 : vector<8x32xf32> to vector<8x32xbf16>
    %c0_14 = arith.constant 0 : index
    %c0_15 = arith.constant 0 : index
    %33 = vector.load %arg6[%c0_14, %c0_15] : memref<32x32xbf16, #tpu.memory_space<vmem>>, vector<32x32xbf16>
    %cst_16 = arith.constant dense<0.000000e+00> : vector<8x32xf32>
    %34 = tpu.matmul %27, %33, %cst_16 {dimension_numbers = #tpu.dot_dimension_numbers<[1], [0], [0], [1], [0, 0, 1, 1], [], []>} : vector<8x32xbf16>, vector<32x32xbf16>, vector<8x32xf32> -> vector<8x32xf32>
    %35 = arith.truncf %34 : vector<8x32xf32> to vector<8x32xbf16>
    %c0_17 = arith.constant 0 : index
    %c0_18 = arith.constant 0 : index
    %36 = vector.load %arg7[%c0_17, %c0_18] : memref<32x32xbf16, #tpu.memory_space<vmem>>, vector<32x32xbf16>
    %cst_19 = arith.constant dense<0.000000e+00> : vector<8x32xf32>
    %37 = tpu.matmul %27, %36, %cst_19 {dimension_numbers = #tpu.dot_dimension_numbers<[1], [0], [0], [1], [0, 0, 1, 1], [], []>} : vector<8x32xbf16>, vector<32x32xbf16>, vector<8x32xf32> -> vector<8x32xf32>
    %38 = arith.truncf %37 : vector<8x32xf32> to vector<8x32xbf16>
    %39 = vector.extract_strided_slice %32 {offsets = [0, 0], sizes = [8, 16], strides = [1, 1]} : vector<8x32xbf16> to vector<8x16xbf16>
    %c0_20 = arith.constant 0 : index
    %c0_21 = arith.constant 0 : index
    %c0_22 = arith.constant 0 : index
    %c0_23 = arith.constant 0 : index
    %40 = vector.load %arg8[%c0_20, %c0_21, %c0_22, %c0_23] : memref<1x2x8x16xbf16, #tpu.memory_space<vmem>>, vector<1x1x8x16xbf16>
    %41 = vector.shape_cast %40 : vector<1x1x8x16xbf16> to vector<8x16xbf16>
    %42 = vector.shape_cast %39 : vector<8x16xbf16> to vector<1x1x8x16xbf16>
    tpu.vector_store %arg8[%c0_20, %c0_21, %c0_22, %c0_23], %42 {strides = array<i32>} : memref<1x2x8x16xbf16, #tpu.memory_space<vmem>>, vector<1x1x8x16xbf16>,
    %43 = vector.extract_strided_slice %35 {offsets = [0, 0], sizes = [8, 16], strides = [1, 1]} : vector<8x32xbf16> to vector<8x16xbf16>
    %c0_24 = arith.constant 0 : index
    %c0_25 = arith.constant 0 : index
    %c0_26 = arith.constant 0 : index
    %c0_27 = arith.constant 0 : index
    %44 = vector.load %arg9[%c0_24, %c0_25, %c0_26, %c0_27] : memref<1x2x8x16xbf16, #tpu.memory_space<vmem>>, vector<1x1x8x16xbf16>
    %45 = vector.shape_cast %44 : vector<1x1x8x16xbf16> to vector<8x16xbf16>
    %46 = vector.shape_cast %43 : vector<8x16xbf16> to vector<1x1x8x16xbf16>
    tpu.vector_store %arg9[%c0_24, %c0_25, %c0_26, %c0_27], %46 {strides = array<i32>} : memref<1x2x8x16xbf16, #tpu.memory_space<vmem>>, vector<1x1x8x16xbf16>,
    %47 = vector.extract_strided_slice %38 {offsets = [0, 0], sizes = [8, 16], strides = [1, 1]} : vector<8x32xbf16> to vector<8x16xbf16>
    %c0_28 = arith.constant 0 : index
    %c0_29 = arith.constant 0 : index
    %c0_30 = arith.constant 0 : index
    %c0_31 = arith.constant 0 : index
    %48 = vector.load %arg10[%c0_28, %c0_29, %c0_30, %c0_31] : memref<1x2x8x16xbf16, #tpu.memory_space<vmem>>, vector<1x1x8x16xbf16>
    %49 = vector.shape_cast %48 : vector<1x1x8x16xbf16> to vector<8x16xbf16>
    %50 = vector.shape_cast %47 : vector<8x16xbf16> to vector<1x1x8x16xbf16>
    tpu.vector_store %arg10[%c0_28, %c0_29, %c0_30, %c0_31], %50 {strides = array<i32>} : memref<1x2x8x16xbf16, #tpu.memory_space<vmem>>, vector<1x1x8x16xbf16>,
    %51 = vector.extract_strided_slice %32 {offsets = [0, 16], sizes = [8, 16], strides = [1, 1]} : vector<8x32xbf16> to vector<8x16xbf16>
    %c0_32 = arith.constant 0 : index
    %c1 = arith.constant 1 : index
    %c0_33 = arith.constant 0 : index
    %c0_34 = arith.constant 0 : index
    %52 = vector.load %arg8[%c0_32, %c1, %c0_33, %c0_34] : memref<1x2x8x16xbf16, #tpu.memory_space<vmem>>, vector<1x1x8x16xbf16>
    %53 = vector.shape_cast %52 : vector<1x1x8x16xbf16> to vector<8x16xbf16>
    %54 = vector.shape_cast %51 : vector<8x16xbf16> to vector<1x1x8x16xbf16>
    tpu.vector_store %arg8[%c0_32, %c1, %c0_33, %c0_34], %54 {strides = array<i32>} : memref<1x2x8x16xbf16, #tpu.memory_space<vmem>>, vector<1x1x8x16xbf16>,
    %55 = vector.extract_strided_slice %35 {offsets = [0, 16], sizes = [8, 16], strides = [1, 1]} : vector<8x32xbf16> to vector<8x16xbf16>
    %c0_35 = arith.constant 0 : index
    %c1_36 = arith.constant 1 : index
    %c0_37 = arith.constant 0 : index
    %c0_38 = arith.constant 0 : index
    %56 = vector.load %arg9[%c0_35, %c1_36, %c0_37, %c0_38] : memref<1x2x8x16xbf16, #tpu.memory_space<vmem>>, vector<1x1x8x16xbf16>
    %57 = vector.shape_cast %56 : vector<1x1x8x16xbf16> to vector<8x16xbf16>
    %58 = vector.shape_cast %55 : vector<8x16xbf16> to vector<1x1x8x16xbf16>
    tpu.vector_store %arg9[%c0_35, %c1_36, %c0_37, %c0_38], %58 {strides = array<i32>} : memref<1x2x8x16xbf16, #tpu.memory_space<vmem>>, vector<1x1x8x16xbf16>,
    %59 = vector.extract_strided_slice %38 {offsets = [0, 16], sizes = [8, 16], strides = [1, 1]} : vector<8x32xbf16> to vector<8x16xbf16>
    %c0_39 = arith.constant 0 : index
    %c1_40 = arith.constant 1 : index
    %c0_41 = arith.constant 0 : index
    %c0_42 = arith.constant 0 : index
    %60 = vector.load %arg10[%c0_39, %c1_40, %c0_41, %c0_42] : memref<1x2x8x16xbf16, #tpu.memory_space<vmem>>, vector<1x1x8x16xbf16>
    %61 = vector.shape_cast %60 : vector<1x1x8x16xbf16> to vector<8x16xbf16>
    %62 = vector.shape_cast %59 : vector<8x16xbf16> to vector<1x1x8x16xbf16>
    tpu.vector_store %arg10[%c0_39, %c1_40, %c0_41, %c0_42], %62 {strides = array<i32>} : memref<1x2x8x16xbf16, #tpu.memory_space<vmem>>, vector<1x1x8x16xbf16>,
    return
  }
  func.func @transform_0(%arg0: i32, %arg1: i32) -> (i32, i32, i32) {
    %c0_i32 = arith.constant 0 : i32
    %c0_i32_0 = arith.constant 0 : i32
    return %arg0, %arg1, %c0_i32 : i32, i32, i32
  }
  func.func @transform_1(%arg0: i32, %arg1: i32) -> (i32, i32) {
    %c0_i32 = arith.constant 0 : i32
    %c0_i32_0 = arith.constant 0 : i32
    %c0_i32_1 = arith.constant 0 : i32
    return %c0_i32, %c0_i32_0 : i32, i32
  }
  func.func @transform_2(%arg0: i32, %arg1: i32) -> (i32, i32) {
    %c0_i32 = arith.constant 0 : i32
    %c0_i32_0 = arith.constant 0 : i32
    %c0_i32_1 = arith.constant 0 : i32
    return %c0_i32, %c0_i32_0 : i32, i32
  }
  func.func @transform_3(%arg0: i32, %arg1: i32) -> (i32, i32) {
    %c0_i32 = arith.constant 0 : i32
    %c0_i32_0 = arith.constant 0 : i32
    %c0_i32_1 = arith.constant 0 : i32
    return %c0_i32, %c0_i32_0 : i32, i32
  }
  func.func @transform_4(%arg0: i32, %arg1: i32) -> (i32, i32) {
    %c0_i32 = arith.constant 0 : i32
    %c0_i32_0 = arith.constant 0 : i32
    %c0_i32_1 = arith.constant 0 : i32
    return %c0_i32, %c0_i32_0 : i32, i32
  }
  func.func @transform_5(%arg0: i32, %arg1: i32) -> (i32, i32) {
    %c0_i32 = arith.constant 0 : i32
    %c0_i32_0 = arith.constant 0 : i32
    %c0_i32_1 = arith.constant 0 : i32
    return %c0_i32, %c0_i32_0 : i32, i32
  }
  func.func @transform_6(%arg0: i32, %arg1: i32) -> (i32, i32, i32, i32) {
    %c0_i32 = arith.constant 0 : i32
    %c0_i32_0 = arith.constant 0 : i32
    %c0_i32_1 = arith.constant 0 : i32
    return %arg0, %c0_i32, %arg1, %c0_i32_0 : i32, i32, i32, i32
  }
  func.func @transform_7(%arg0: i32, %arg1: i32) -> (i32, i32, i32, i32) {
    %c0_i32 = arith.constant 0 : i32
    %c0_i32_0 = arith.constant 0 : i32
    %c0_i32_1 = arith.constant 0 : i32
    return %arg0, %c0_i32, %arg1, %c0_i32_0 : i32, i32, i32, i32
  }
  func.func @transform_8(%arg0: i32, %arg1: i32) -> (i32, i32, i32, i32) {
    %c0_i32 = arith.constant 0 : i32
    %c0_i32_0 = arith.constant 0 : i32
    %c0_i32_1 = arith.constant 0 : i32
    return %arg0, %c0_i32, %arg1, %c0_i32_0 : i32, i32, i32, i32
  }
}

module attributes {stable_mosaic.version = 11 : i64} {
  func.func @_qkv_kernel(%arg0: i32, %arg1: i32, %arg2: memref<1x8x32xbf16, #tpu.memory_space<vmem>>, %arg3: memref<1x32xf32, #tpu.memory_space<vmem>>, %arg4: memref<1x32xf32, #tpu.memory_space<vmem>>, %arg5: memref<32x32xbf16, #tpu.memory_space<vmem>>, %arg6: memref<32x32xbf16, #tpu.memory_space<vmem>>, %arg7: memref<32x32xbf16, #tpu.memory_space<vmem>>, %arg8: memref<1x2x8x16xbf16, #tpu.memory_space<vmem>>, %arg9: memref<1x2x8x16xbf16, #tpu.memory_space<vmem>>, %arg10: memref<1x2x8x16xbf16, #tpu.memory_space<vmem>>) attributes {dimension_semantics = [#tpu.dimension_semantics<parallel>, #tpu.dimension_semantics<parallel>], iteration_bounds = array<i64: 2, 1>, scalar_prefetch = 0 : i64, scratch_operands = 0 : i64, tpu.core_type = #tpu.core_type<tc>, window_params = [{transform_indices = @transform_0, window_bounds = array<i64: 1, 8, 32>}, {pipeline_mode = #tpu.pipeline_mode<synchronous>, transform_indices = @transform_1, window_bounds = array<i64: 1, 32>}, {pipeline_mode = #tpu.pipeline_mode<synchronous>, transform_indices = @transform_2, window_bounds = array<i64: 1, 32>}, {pipeline_mode = #tpu.pipeline_mode<synchronous>, transform_indices = @transform_3, window_bounds = array<i64: 32, 32>}, {pipeline_mode = #tpu.pipeline_mode<synchronous>, transform_indices = @transform_4, window_bounds = array<i64: 32, 32>}, {pipeline_mode = #tpu.pipeline_mode<synchronous>, transform_indices = @transform_5, window_bounds = array<i64: 32, 32>}, {transform_indices = @transform_6, window_bounds = array<i64: 1, 2, 8, 16>}, {transform_indices = @transform_7, window_bounds = array<i64: 1, 2, 8, 16>}, {transform_indices = @transform_8, window_bounds = array<i64: 1, 2, 8, 16>}]} {
    %c0 = arith.constant 0 : index
    %c0_0 = arith.constant 0 : index
    %c0_1 = arith.constant 0 : index
    %0 = vector.load %arg2[%c0, %c0_0, %c0_1] : memref<1x8x32xbf16, #tpu.memory_space<vmem>>, vector<1x8x32xbf16>
    %1 = vector.shape_cast %0 : vector<1x8x32xbf16> to vector<8x32xbf16>
    %2 = arith.extf %1 : vector<8x32xbf16> to vector<8x32xf32>
    %c0_2 = arith.constant 0 : index
    %c0_3 = arith.constant 0 : index
    %3 = vector.load %arg3[%c0_2, %c0_3] : memref<1x32xf32, #tpu.memory_space<vmem>>, vector<1x32xf32>
    %c0_4 = arith.constant 0 : index
    %c0_5 = arith.constant 0 : index
    %4 = vector.load %arg4[%c0_4, %c0_5] : memref<1x32xf32, #tpu.memory_space<vmem>>, vector<1x32xf32>
    %cst = arith.constant dense<0.000000e+00> : vector<8xf32>
    %5 = vector.multi_reduction <add>, %2, %cst [1] : vector<8x32xf32> to vector<8xf32>
    %6 = vector.shape_cast %5 : vector<8xf32> to vector<8x1xf32>
    %cst_6 = arith.constant 3.200000e+01 : f32
    %7 = vector.broadcast %cst_6 : f32 to vector<8x1xf32>
    %8 = arith.divf %6, %7 : vector<8x1xf32>
    %9 = vector.broadcast %8 : vector<8x1xf32> to vector<8x32xf32>
    %10 = arith.subf %2, %9 : vector<8x32xf32>
    %11 = arith.mulf %10, %10 : vector<8x32xf32>
    %cst_7 = arith.constant dense<0.000000e+00> : vector<8xf32>
    %12 = vector.multi_reduction <add>, %11, %cst_7 [1] : vector<8x32xf32> to vector<8xf32>
    %13 = vector.shape_cast %12 : vector<8xf32> to vector<8x1xf32>
    %cst_8 = arith.constant 3.200000e+01 : f32
    %14 = vector.broadcast %cst_8 : f32 to vector<8x1xf32>
    %15 = arith.divf %13, %14 : vector<8x1xf32>
    %16 = vector.broadcast %8 : vector<8x1xf32> to vector<8x32xf32>
    %17 = arith.subf %2, %16 : vector<8x32xf32>
    %cst_9 = arith.constant 9.99999974E-6 : f32
    %18 = vector.broadcast %cst_9 : f32 to vector<8x1xf32>
    %19 = arith.addf %15, %18 : vector<8x1xf32>
    %20 = math.rsqrt %19 : vector<8x1xf32>
    %21 = vector.broadcast %20 : vector<8x1xf32> to vector<8x32xf32>
    %22 = arith.mulf %17, %21 : vector<8x32xf32>
    %23 = vector.broadcast %3 : vector<1x32xf32> to vector<8x32xf32>
    %24 = arith.mulf %22, %23 : vector<8x32xf32>
    %25 = vector.broadcast %4 : vector<1x32xf32> to vector<8x32xf32>
    %26 = arith.addf %24, %25 : vector<8x32xf32>
    %27 = arith.truncf %26 : vector<8x32xf32> to vector<8x32xbf16>
    %c0_10 = arith.constant 0 : index
    %c0_11 = arith.constant 0 : index
    %28 = vector.load %arg5[%c0_10, %c0_11] : memref<32x32xbf16, #tpu.memory_space<vmem>>, vector<32x32xbf16>
    %cst_12 = arith.constant dense<0.000000e+00> : vector<8x32xf32>
    %29 = tpu.matmul %27, %28, %cst_12 {dimension_numbers = #tpu.dot_dimension_numbers<[1], [0], [0], [1], [0, 0, 1, 1], [], []>} : vector<8x32xbf16>, vector<32x32xbf16>, vector<8x32xf32> -> vector<8x32xf32>
    %cst_13 = arith.constant 2.500000e-01 : f32
    %30 = vector.broadcast %cst_13 : f32 to vector<8x32xf32>
    %31 = arith.mulf %29, %30 : vector<8x32xf32>
    %32 = arith.truncf %31 : vector<8x32xf32> to vector<8x32xbf16>
    %c0_14 = arith.constant 0 : index
    %c0_15 = arith.constant 0 : index
    %33 = vector.load %arg6[%c0_14, %c0_15] : memref<32x32xbf16, #tpu.memory_space<vmem>>, vector<32x32xbf16>
    %cst_16 = arith.constant dense<0.000000e+00> : vector<8x32xf32>
    %34 = tpu.matmul %27, %33, %cst_16 {dimension_numbers = #tpu.dot_dimension_numbers<[1], [0], [0], [1], [0, 0, 1, 1], [], []>} : vector<8x32xbf16>, vector<32x32xbf16>, vector<8x32xf32> -> vector<8x32xf32>
    %35 = arith.truncf %34 : vector<8x32xf32> to vector<8x32xbf16>
    %c0_17 = arith.constant 0 : index
    %c0_18 = arith.constant 0 : index
    %36 = vector.load %arg7[%c0_17, %c0_18] : memref<32x32xbf16, #tpu.memory_space<vmem>>, vector<32x32xbf16>
    %cst_19 = arith.constant dense<0.000000e+00> : vector<8x32xf32>
    %37 = tpu.matmul %27, %36, %cst_19 {dimension_numbers = #tpu.dot_dimension_numbers<[1], [0], [0], [1], [0, 0, 1, 1], [], []>} : vector<8x32xbf16>, vector<32x32xbf16>, vector<8x32xf32> -> vector<8x32xf32>
    %38 = arith.truncf %37 : vector<8x32xf32> to vector<8x32xbf16>
    %39 = vector.extract_strided_slice %32 {offsets = [0, 0], sizes = [8, 16], strides = [1, 1]} : vector<8x32xbf16> to vector<8x16xbf16>
    %c0_20 = arith.constant 0 : index
    %c0_21 = arith.constant 0 : index
    %c0_22 = arith.constant 0 : index
    %c0_23 = arith.constant 0 : index
    %40 = vector.load %arg8[%c0_20, %c0_21, %c0_22, %c0_23] : memref<1x2x8x16xbf16, #tpu.memory_space<vmem>>, vector<1x1x8x16xbf16>
    %41 = vector.shape_cast %40 : vector<1x1x8x16xbf16> to vector<8x16xbf16>
    %42 = vector.shape_cast %39 : vector<8x16xbf16> to vector<1x1x8x16xbf16>
    tpu.vector_store %arg8[%c0_20, %c0_21, %c0_22, %c0_23], %42 {strides = array<i32>} : memref<1x2x8x16xbf16, #tpu.memory_space<vmem>>, vector<1x1x8x16xbf16>,
    %43 = vector.extract_strided_slice %35 {offsets = [0, 0], sizes = [8, 16], strides = [1, 1]} : vector<8x32xbf16> to vector<8x16xbf16>
    %c0_24 = arith.constant 0 : index
    %c0_25 = arith.constant 0 : index
    %c0_26 = arith.constant 0 : index
    %c0_27 = arith.constant 0 : index
    %44 = vector.load %arg9[%c0_24, %c0_25, %c0_26, %c0_27] : memref<1x2x8x16xbf16, #tpu.memory_space<vmem>>, vector<1x1x8x16xbf16>
    %45 = vector.shape_cast %44 : vector<1x1x8x16xbf16> to vector<8x16xbf16>
    %46 = vector.shape_cast %43 : vector<8x16xbf16> to vector<1x1x8x16xbf16>
    tpu.vector_store %arg9[%c0_24, %c0_25, %c0_26, %c0_27], %46 {strides = array<i32>} : memref<1x2x8x16xbf16, #tpu.memory_space<vmem>>, vector<1x1x8x16xbf16>,
    %47 = vector.extract_strided_slice %38 {offsets = [0, 0], sizes = [8, 16], strides = [1, 1]} : vector<8x32xbf16> to vector<8x16xbf16>
    %c0_28 = arith.constant 0 : index
    %c0_29 = arith.constant 0 : index
    %c0_30 = arith.constant 0 : index
    %c0_31 = arith.constant 0 : index
    %48 = vector.load %arg10[%c0_28, %c0_29, %c0_30, %c0_31] : memref<1x2x8x16xbf16, #tpu.memory_space<vmem>>, vector<1x1x8x16xbf16>
    %49 = vector.shape_cast %48 : vector<1x1x8x16xbf16> to vector<8x16xbf16>
    %50 = vector.shape_cast %47 : vector<8x16xbf16> to vector<1x1x8x16xbf16>
    tpu.vector_store %arg10[%c0_28, %c0_29, %c0_30, %c0_31], %50 {strides = array<i32>} : memref<1x2x8x16xbf16, #tpu.memory_space<vmem>>, vector<1x1x8x16xbf16>,
    %51 = vector.extract_strided_slice %32 {offsets = [0, 16], sizes = [8, 16], strides = [1, 1]} : vector<8x32xbf16> to vector<8x16xbf16>
    %c0_32 = arith.constant 0 : index
    %c1 = arith.constant 1 : index
    %c0_33 = arith.constant 0 : index
    %c0_34 = arith.constant 0 : index
    %52 = vector.load %arg8[%c0_32, %c1, %c0_33, %c0_34] : memref<1x2x8x16xbf16, #tpu.memory_space<vmem>>, vector<1x1x8x16xbf16>
    %53 = vector.shape_cast %52 : vector<1x1x8x16xbf16> to vector<8x16xbf16>
    %54 = vector.shape_cast %51 : vector<8x16xbf16> to vector<1x1x8x16xbf16>
    tpu.vector_store %arg8[%c0_32, %c1, %c0_33, %c0_34], %54 {strides = array<i32>} : memref<1x2x8x16xbf16, #tpu.memory_space<vmem>>, vector<1x1x8x16xbf16>,
    %55 = vector.extract_strided_slice %35 {offsets = [0, 16], sizes = [8, 16], strides = [1, 1]} : vector<8x32xbf16> to vector<8x16xbf16>
    %c0_35 = arith.constant 0 : index
    %c1_36 = arith.constant 1 : index
    %c0_37 = arith.constant 0 : index
    %c0_38 = arith.constant 0 : index
    %56 = vector.load %arg9[%c0_35, %c1_36, %c0_37, %c0_38] : memref<1x2x8x16xbf16, #tpu.memory_space<vmem>>, vector<1x1x8x16xbf16>
    %57 = vector.shape_cast %56 : vector<1x1x8x16xbf16> to vector<8x16xbf16>
    %58 = vector.shape_cast %55 : vector<8x16xbf16> to vector<1x1x8x16xbf16>
    tpu.vector_store %arg9[%c0_35, %c1_36, %c0_37, %c0_38], %58 {strides = array<i32>} : memref<1x2x8x16xbf16, #tpu.memory_space<vmem>>, vector<1x1x8x16xbf16>,
    %59 = vector.extract_strided_slice %38 {offsets = [0, 16], sizes = [8, 16], strides = [1, 1]} : vector<8x32xbf16> to vector<8x16xbf16>
    %c0_39 = arith.constant 0 : index
    %c1_40 = arith.constant 1 : index
    %c0_41 = arith.constant 0 : index
    %c0_42 = arith.constant 0 : index
    %60 = vector.load %arg10[%c0_39, %c1_40, %c0_41, %c0_42] : memref<1x2x8x16xbf16, #tpu.memory_space<vmem>>, vector<1x1x8x16xbf16>
    %61 = vector.shape_cast %60 : vector<1x1x8x16xbf16> to vector<8x16xbf16>
    %62 = vector.shape_cast %59 : vector<8x16xbf16> to vector<1x1x8x16xbf16>
    tpu.vector_store %arg10[%c0_39, %c1_40, %c0_41, %c0_42], %62 {strides = array<i32>} : memref<1x2x8x16xbf16, #tpu.memory_space<vmem>>, vector<1x1x8x16xbf16>,
    return
  }
  func.func @transform_0(%arg0: i32, %arg1: i32) -> (i32, i32, i32) {
    %c0_i32 = arith.constant 0 : i32
    %c0_i32_0 = arith.constant 0 : i32
    return %arg0, %arg1, %c0_i32 : i32, i32, i32
  }
  func.func @transform_1(%arg0: i32, %arg1: i32) -> (i32, i32) {
    %c0_i32 = arith.constant 0 : i32
    %c0_i32_0 = arith.constant 0 : i32
    %c0_i32_1 = arith.constant 0 : i32
    return %c0_i32, %c0_i32_0 : i32, i32
  }
  func.func @transform_2(%arg0: i32, %arg1: i32) -> (i32, i32) {
    %c0_i32 = arith.constant 0 : i32
    %c0_i32_0 = arith.constant 0 : i32
    %c0_i32_1 = arith.constant 0 : i32
    return %c0_i32, %c0_i32_0 : i32, i32
  }
  func.func @transform_3(%arg0: i32, %arg1: i32) -> (i32, i32) {
    %c0_i32 = arith.constant 0 : i32
    %c0_i32_0 = arith.constant 0 : i32
    %c0_i32_1 = arith.constant 0 : i32
    return %c0_i32, %c0_i32_0 : i32, i32
  }
  func.func @transform_4(%arg0: i32, %arg1: i32) -> (i32, i32) {
    %c0_i32 = arith.constant 0 : i32
    %c0_i32_0 = arith.constant 0 : i32
    %c0_i32_1 = arith.constant 0 : i32
    return %c0_i32, %c0_i32_0 : i32, i32
  }
  func.func @transform_5(%arg0: i32, %arg1: i32) -> (i32, i32) {
    %c0_i32 = arith.constant 0 : i32
    %c0_i32_0 = arith.constant 0 : i32
    %c0_i32_1 = arith.constant 0 : i32
    return %c0_i32, %c0_i32_0 : i32, i32
  }
  func.func @transform_6(%arg0: i32, %arg1: i32) -> (i32, i32, i32, i32) {
    %c0_i32 = arith.constant 0 : i32
    %c0_i32_0 = arith.constant 0 : i32
    %c0_i32_1 = arith.constant 0 : i32
    return %arg0, %c0_i32, %arg1, %c0_i32_0 : i32, i32, i32, i32
  }
  func.func @transform_7(%arg0: i32, %arg1: i32) -> (i32, i32, i32, i32) {
    %c0_i32 = arith.constant 0 : i32
    %c0_i32_0 = arith.constant 0 : i32
    %c0_i32_1 = arith.constant 0 : i32
    return %arg0, %c0_i32, %arg1, %c0_i32_0 : i32, i32, i32, i32
  }
  func.func @transform_8(%arg0: i32, %arg1: i32) -> (i32, i32, i32, i32) {
    %c0_i32 = arith.constant 0 : i32
    %c0_i32_0 = arith.constant 0 : i32
    %c0_i32_1 = arith.constant 0 : i32
    return %arg0, %c0_i32, %arg1, %c0_i32_0 : i32, i32, i32, i32
  }
}

</mosaic_0001>

<llo_original>
// kernel: tpu_custom_call.1
$region0: #{tpu_custom_call.1}
  #allocation0 [shape = 'u32[]', space=smem, size = 0x4, offset = 0x4, fixed_abs, tag = 'smem constant byte address 0x4 - core index']
  #allocation1 [shape = 'u32[72,128]{1,0:T(1,128)}', space=vmem, size = 0x9000, scoped, tag = 'internal scratch']
  %s0 = inlined_call_operand.hbm [shape: bf16[2,8,32], index: 0, kind: input, shape index: {}]
  %s1 = inlined_call_operand.hbm [shape: f32[1,32], index: 1, kind: input, shape index: {}]
  %s2 = inlined_call_operand.vmem [shape: f32[1,32], index: 2, kind: input, shape index: {}]
  %s3 = inlined_call_operand.hbm [shape: bf16[32,32], index: 3, kind: input, shape index: {}]
  %s4 = inlined_call_operand.hbm [shape: bf16[32,32], index: 4, kind: input, shape index: {}]
  %s5 = inlined_call_operand.hbm [shape: bf16[32,32], index: 5, kind: input, shape index: {}]
  %s6 = inlined_call_operand.hbm [shape: bf16[2,2,8,16], index: 6, kind: output, shape index: {0}]
  %s7 = inlined_call_operand.hbm [shape: bf16[2,2,8,16], index: 7, kind: output, shape index: {1}]
  %s8 = inlined_call_operand.hbm [shape: bf16[2,2,8,16], index: 8, kind: output, shape index: {2}]
  %9 = xla_tuple %s6, %s7, %s8
  %s10 = sld [smem:[#allocation0]]
  $region93: #{tpu_custom_call.1} parent=0
    _
  %s12 = ssub.s32 1, %s10
  %s13 = scalar_select 0, %s12, %s10
  $region1: #{tpu_custom_call.1} parent=0
    #allocation2 [shape = 'u8[4096]{0}', space=vmem, size = 0x1000, scoped, tag = 'input window, operand 0']
    #allocation3 [shape = 's32[2]{0}', space=sflag, size = 0x8, scoped, tag = 'scoped memory for tpu_custom_call.1']
    #allocation4 [shape = 's32[2]{0}', space=sflag, size = 0x8, scoped, tag = 'scoped memory for tpu_custom_call.1']
    #allocation5 [shape = 'u8[512]{0}', space=vmem, size = 0x400, scoped, tag = 'input window, operand 1, single buffered']
    #allocation6 [shape = 's32[1]{0}', space=sflag, size = 0x4, scoped, tag = 'scoped memory for tpu_custom_call.1']
    #allocation7 [shape = 'u8[8192]{0}', space=vmem, size = 0x2000, scoped, tag = 'input window, operand 3, single buffered']
    #allocation8 [shape = 'u8[8192]{0}', space=vmem, size = 0x2000, scoped, tag = 'input window, operand 4, single buffered']
    #allocation9 [shape = 's32[1]{0}', space=sflag, size = 0x4, scoped, tag = 'scoped memory for tpu_custom_call.1']
    #allocation10 [shape = 'u8[8192]{0}', space=vmem, size = 0x2000, scoped, tag = 'input window, operand 5, single buffered']
    #allocation11 [shape = 'u8[8192]{0}', space=vmem, size = 0x2000, scoped, tag = 'output window, operand 0']
    #allocation12 [shape = 'u8[8192]{0}', space=vmem, size = 0x2000, scoped, tag = 'output window, operand 1']
    #allocation13 [shape = 's32[2]{0}', space=sflag, size = 0x8, scoped, tag = 'scoped memory for tpu_custom_call.1']
    #allocation14 [shape = 'u8[8192]{0}', space=vmem, size = 0x2000, scoped, tag = 'output window, operand 2']
    %14 = vsyncpa [#allocation3], 0
    %s15 = scalar_lea.sflag [#allocation3], 1
    %16 = vsyncpa %s15, 0
    %17 = vsyncpa [#allocation6], 0
    %18 = vsyncpa [#allocation9], 0
    %19 = vsyncpa [#allocation4], 0
    %s20 = scalar_lea.sflag [#allocation4], 1
    %21 = vsyncpa %s20, 0
    %22 = vsyncpa [#allocation13], 0
    %s23 = scalar_lea.sflag [#allocation13], 1
    %24 = vsyncpa %s23, 0
    loop: start=0, step=1, limit=4
    $region2: #{tpu_custom_call.1} parent=1 // loop_pre_header
      _
    $region3: #{tpu_custom_call.1} parent=1 // loop_header
      %s26 = sphi 0, %s30
      %p27 = scmp.ge.s32.totalorder %s26, 4
      %s33 = sphi 0, %s45
      %s34 = sphi 0, %s41
      %s35 = sphi 0, %s33
      %s36 = sphi 0, %s34
      %s37 = sphi 0, %s35
      %s38 = sphi 0, %s36
      %s50 = sphi 0, %s52
      %s53 = sphi 0, %s50
      %s54 = sphi 0, %s53
      %s70 = sphi 0, %s54
      %s74 = sphi 0, %s74
      %s76 = sphi 0, %s74
      %s77 = sphi 0, %s76
      %s91 = sphi 0, %s77
      %s95 = sphi 0, %s95
      %s97 = sphi 0, %s95
      %s98 = sphi 0, %s97
      %s112 = sphi 0, %s98
      %s116 = sphi 0, %s116
      %s118 = sphi 0, %s116
      %s119 = sphi 0, %s118
      %s133 = sphi 0, %s119
      %s137 = sphi 0, %s137
      %s139 = sphi 0, %s137
      %s140 = sphi 0, %s139
      %s154 = sphi 0, %s140
      %s158 = sphi 0, %s158
      %s160 = sphi 0, %s158
      %s161 = sphi 0, %s160
      %s175 = sphi 0, %s161
      %s183 = sphi 0, %s185
      %s186 = sphi 0, %s183
      %s187 = sphi 0, %s186
      %s203 = sphi 0, %s187
      %s211 = sphi 0, %s213
      %s214 = sphi 0, %s211
      %s215 = sphi 0, %s214
      %s231 = sphi 0, %s215
      %s239 = sphi 0, %s241
      %s242 = sphi 0, %s239
      %s243 = sphi 0, %s242
      %s259 = sphi 0, %s243
    $region4: #{tpu_custom_call.1} parent=1 // loop_header_branch
      %29 = sbr.rel (%p27) target = $region8
    $region5: #{tpu_custom_call.1} parent=1 // loop_body
      %s31 = ssub.s32 %s26, 1
      %s32 = ssub.s32 %s26, 2
      %s39 = sadd.s32 1, %s34
      %p40 = scmp.ge.s32.totalorder %s39, 1
      %s41 = scalar_select %p40, 0, %s39
      %s42 = sadd.s32 1, %s33
      %s43 = scalar_select %p40, %s42, %s33
      %p44 = scmp.ge.s32.totalorder %s43, 2
      %s45 = scalar_select %p44, 0, %s43
      %s46 = ssub.s32 %s33, %s45
      %s47 = ssub.s32 %s34, %s41
      %s48 = sor.u32 %s46, %s47
      %p49 = scmp.eq.s32.totalorder %s48, 0
      %s51 = sadd.s32 %s50, 1
      %s52 = scalar_select %p49, %s50, %s51
      %p55 = pneg %p49
      %p56 = scmp.eq.s32.totalorder %s26, 1
      %p57 = por %p55, %p56
      %p58 = scmp.ne.s32.totalorder %s50, %s53
      %p59 = scmp.eq.s32.totalorder %s26, 0
      %p60 = por %p58, %p59
      %p61 = scmp.ne.s32.totalorder %s50, %s53
      %p62 = scmp.eq.s32.totalorder %s31, 1
      %p63 = por %p61, %p62
      %p64 = scmp.ne.s32.totalorder %s53, %s54
      %p65 = scmp.eq.s32.totalorder %s31, 0
      %p66 = por %p64, %p65
      %p67 = scmp.ne.s32.totalorder %s53, %s54
      %p68 = scmp.eq.s32.totalorder %s32, 1
      %p69 = por %p67, %p68
      %p71 = scmp.ne.s32.totalorder %s54, %s70
      %p72 = scmp.eq.s32.totalorder %s32, 0
      %p73 = por %p71, %p72
      %s75 = sadd.s32 %s74, 1
      %p78 = scmp.eq.s32.totalorder %s26, 1
      %p79 = scmp.ne.s32.totalorder %s74, %s76
      %p80 = scmp.eq.s32.totalorder %s26, 0
      %p81 = por %p79, %p80
      %p82 = scmp.ne.s32.totalorder %s74, %s76
      %p83 = scmp.eq.s32.totalorder %s31, 1
      %p84 = por %p82, %p83
      %p85 = scmp.ne.s32.totalorder %s76, %s77
      %p86 = scmp.eq.s32.totalorder %s31, 0
      %p87 = por %p85, %p86
      %p88 = scmp.ne.s32.totalorder %s76, %s77
      %p89 = scmp.eq.s32.totalorder %s32, 1
      %p90 = por %p88, %p89
      %p92 = scmp.ne.s32.totalorder %s77, %s91
      %p93 = scmp.eq.s32.totalorder %s32, 0
      %p94 = por %p92, %p93
      %s96 = sadd.s32 %s95, 1
      %p99 = scmp.eq.s32.totalorder %s26, 1
      %p100 = scmp.ne.s32.totalorder %s95, %s97
      %p101 = scmp.eq.s32.totalorder %s26, 0
      %p102 = por %p100, %p101
      %p103 = scmp.ne.s32.totalorder %s95, %s97
      %p104 = scmp.eq.s32.totalorder %s31, 1
      %p105 = por %p103, %p104
      %p106 = scmp.ne.s32.totalorder %s97, %s98
      %p107 = scmp.eq.s32.totalorder %s31, 0
      %p108 = por %p106, %p107
      %p109 = scmp.ne.s32.totalorder %s97, %s98
      %p110 = scmp.eq.s32.totalorder %s32, 1
      %p111 = por %p109, %p110
      %p113 = scmp.ne.s32.totalorder %s98, %s112
      %p114 = scmp.eq.s32.totalorder %s32, 0
      %p115 = por %p113, %p114
      %s117 = sadd.s32 %s116, 1
      %p120 = scmp.eq.s32.totalorder %s26, 1
      %p121 = scmp.ne.s32.totalorder %s116, %s118
      %p122 = scmp.eq.s32.totalorder %s26, 0
      %p123 = por %p121, %p122
      %p124 = scmp.ne.s32.totalorder %s116, %s118
      %p125 = scmp.eq.s32.totalorder %s31, 1
      %p126 = por %p124, %p125
      %p127 = scmp.ne.s32.totalorder %s118, %s119
      %p128 = scmp.eq.s32.totalorder %s31, 0
      %p129 = por %p127, %p128
      %p130 = scmp.ne.s32.totalorder %s118, %s119
      %p131 = scmp.eq.s32.totalorder %s32, 1
      %p132 = por %p130, %p131
      %p134 = scmp.ne.s32.totalorder %s119, %s133
      %p135 = scmp.eq.s32.totalorder %s32, 0
      %p136 = por %p134, %p135
      %s138 = sadd.s32 %s137, 1
      %p141 = scmp.eq.s32.totalorder %s26, 1
      %p142 = scmp.ne.s32.totalorder %s137, %s139
      %p143 = scmp.eq.s32.totalorder %s26, 0
      %p144 = por %p142, %p143
      %p145 = scmp.ne.s32.totalorder %s137, %s139
      %p146 = scmp.eq.s32.totalorder %s31, 1
      %p147 = por %p145, %p146
      %p148 = scmp.ne.s32.totalorder %s139, %s140
      %p149 = scmp.eq.s32.totalorder %s31, 0
      %p150 = por %p148, %p149
      %p151 = scmp.ne.s32.totalorder %s139, %s140
      %p152 = scmp.eq.s32.totalorder %s32, 1
      %p153 = por %p151, %p152
      %p155 = scmp.ne.s32.totalorder %s140, %s154
      %p156 = scmp.eq.s32.totalorder %s32, 0
      %p157 = por %p155, %p156
      %s159 = sadd.s32 %s158, 1
      %p162 = scmp.eq.s32.totalorder %s26, 1
      %p163 = scmp.ne.s32.totalorder %s158, %s160
      %p164 = scmp.eq.s32.totalorder %s26, 0
      %p165 = por %p163, %p164
      %p166 = scmp.ne.s32.totalorder %s158, %s160
      %p167 = scmp.eq.s32.totalorder %s31, 1
      %p168 = por %p166, %p167
      %p169 = scmp.ne.s32.totalorder %s160, %s161
      %p170 = scmp.eq.s32.totalorder %s31, 0
      %p171 = por %p169, %p170
      %p172 = scmp.ne.s32.totalorder %s160, %s161
      %p173 = scmp.eq.s32.totalorder %s32, 1
      %p174 = por %p172, %p173
      %p176 = scmp.ne.s32.totalorder %s161, %s175
      %p177 = scmp.eq.s32.totalorder %s32, 0
      %p178 = por %p176, %p177
      %s179 = ssub.s32 %s33, %s45
      %s180 = ssub.s32 %s34, %s41
      %s181 = sor.u32 %s179, %s180
      %p182 = scmp.eq.s32.totalorder %s181, 0
      %s184 = sadd.s32 %s183, 1
      %s185 = scalar_select %p182, %s183, %s184
      %p188 = pneg %p182
      %p189 = scmp.eq.s32.totalorder %s26, 1
      %p190 = por %p188, %p189
      %p191 = scmp.ne.s32.totalorder %s183, %s186
      %p192 = scmp.eq.s32.totalorder %s26, 0
      %p193 = por %p191, %p192
      %p194 = scmp.ne.s32.totalorder %s183, %s186
      %p195 = scmp.eq.s32.totalorder %s31, 1
      %p196 = por %p194, %p195
      %p197 = scmp.ne.s32.totalorder %s186, %s187
      %p198 = scmp.eq.s32.totalorder %s31, 0
      %p199 = por %p197, %p198
      %p200 = scmp.ne.s32.totalorder %s186, %s187
      %p201 = scmp.eq.s32.totalorder %s32, 1
      %p202 = por %p200, %p201
      %p204 = scmp.ne.s32.totalorder %s187, %s203
      %p205 = scmp.eq.s32.totalorder %s32, 0
      %p206 = por %p204, %p205
      %s207 = ssub.s32 %s33, %s45
      %s208 = ssub.s32 %s34, %s41
      %s209 = sor.u32 %s207, %s208
      %p210 = scmp.eq.s32.totalorder %s209, 0
      %s212 = sadd.s32 %s211, 1
      %s213 = scalar_select %p210, %s211, %s212
      %p216 = pneg %p210
      %p217 = scmp.eq.s32.totalorder %s26, 1
      %p218 = por %p216, %p217
      %p219 = scmp.ne.s32.totalorder %s211, %s214
      %p220 = scmp.eq.s32.totalorder %s26, 0
      %p221 = por %p219, %p220
      %p222 = scmp.ne.s32.totalorder %s211, %s214
      %p223 = scmp.eq.s32.totalorder %s31, 1
      %p224 = por %p222, %p223
      %p225 = scmp.ne.s32.totalorder %s214, %s215
      %p226 = scmp.eq.s32.totalorder %s31, 0
      %p227 = por %p225, %p226
      %p228 = scmp.ne.s32.totalorder %s214, %s215
      %p229 = scmp.eq.s32.totalorder %s32, 1
      %p230 = por %p228, %p229
      %p232 = scmp.ne.s32.totalorder %s215, %s231
      %p233 = scmp.eq.s32.totalorder %s32, 0
      %p234 = por %p232, %p233
      %s235 = ssub.s32 %s33, %s45
      %s236 = ssub.s32 %s34, %s41
      %s237 = sor.u32 %s235, %s236
      %p238 = scmp.eq.s32.totalorder %s237, 0
      %s240 = sadd.s32 %s239, 1
      %s241 = scalar_select %p238, %s239, %s240
      %p244 = pneg %p238
      %p245 = scmp.eq.s32.totalorder %s26, 1
      %p246 = por %p244, %p245
      %p247 = scmp.ne.s32.totalorder %s239, %s242
      %p248 = scmp.eq.s32.totalorder %s26, 0
      %p249 = por %p247, %p248
      %p250 = scmp.ne.s32.totalorder %s239, %s242
      %p251 = scmp.eq.s32.totalorder %s31, 1
      %p252 = por %p250, %p251
      %p253 = scmp.ne.s32.totalorder %s242, %s243
      %p254 = scmp.eq.s32.totalorder %s31, 0
      %p255 = por %p253, %p254
      %p256 = scmp.ne.s32.totalorder %s242, %s243
      %p257 = scmp.eq.s32.totalorder %s32, 1
      %p258 = por %p256, %p257
      %p260 = scmp.ne.s32.totalorder %s243, %s259
      %p261 = scmp.eq.s32.totalorder %s32, 0
      %p262 = por %p260, %p261
      %p263 = scmp.le.s32.totalorder 1, %s26
      %p264 = scmp.lt.s32.totalorder %s26, 3
      %p265 = pnand %p263, %p264
      %p266 = pneg %p265
      // Predicated region
      $region9: #{tpu_custom_call.1} parent=5 // pred_check
        _
      $region10: #{tpu_custom_call.1} parent=5 // pred_check_branch
        %268 = sbr.rel (%p265) target = $region12
      $region11: #{tpu_custom_call.1} parent=5 // pred_region
        %s269 = ssub.s32 %s26, 1
        // Predicated region
        $region13: #{tpu_custom_call.1} parent=11 // pred_check
          %p270 = pneg %p87
        $region14: #{tpu_custom_call.1} parent=11 // pred_check_branch
          %272 = sbr.rel (%p270) target = $region16
        $region15: #{tpu_custom_call.1} parent=11 // pred_region
          %274 = vsyncadd [#allocation6], 0
          %s276 = sshll.u32 %s1, 4
          %s277 = int_to_ptr.hbm [resolvable:$true] %s276
          %s278 = sshll.u32 [#allocation5], 4
          %s279 = int_to_ptr.vmem [resolvable:$true] %s278
          %281 = dma.hbm_to_vmem [thread:$0]  %s277, 16, %s279, [#allocation6]
        $region16: #{tpu_custom_call.1} parent=11 // pred_fallthru
          _
        // Predicated region
        $region17: #{tpu_custom_call.1} parent=11 // pred_check
          %p282 = pneg %p108
        $region18: #{tpu_custom_call.1} parent=11 // pred_check_branch
          %284 = sbr.rel (%p282) target = $region20
        $region19: #{tpu_custom_call.1} parent=11 // pred_region
          _
        $region20: #{tpu_custom_call.1} parent=11 // pred_fallthru
          _
        // Predicated region
        $region21: #{tpu_custom_call.1} parent=11 // pred_check
          %p285 = pneg %p129
        $region22: #{tpu_custom_call.1} parent=11 // pred_check_branch
          %287 = sbr.rel (%p285) target = $region24
        $region23: #{tpu_custom_call.1} parent=11 // pred_region
          %289 = vsyncadd [#allocation6], 0
          %s290 = sshll.u32 %s3, 4
          %s291 = int_to_ptr.hbm [resolvable:$true] %s290
          %s292 = sshll.u32 [#allocation7], 4
          %s293 = int_to_ptr.vmem [resolvable:$true] %s292
          %298 = dma.hbm_to_vmem [thread:$0]  %s291, 256, %s293, [#allocation6], 64, 64, 4
        $region24: #{tpu_custom_call.1} parent=11 // pred_fallthru
          _
        // Predicated region
        $region25: #{tpu_custom_call.1} parent=11 // pred_check
          %p299 = pneg %p150
        $region26: #{tpu_custom_call.1} parent=11 // pred_check_branch
          %301 = sbr.rel (%p299) target = $region28
        $region27: #{tpu_custom_call.1} parent=11 // pred_region
          %303 = vsyncadd [#allocation9], 0
          %s304 = sshll.u32 %s4, 4
          %s305 = int_to_ptr.hbm [resolvable:$true] %s304
          %s306 = sshll.u32 [#allocation8], 4
          %s307 = int_to_ptr.vmem [resolvable:$true] %s306
          %312 = dma.hbm_to_vmem [thread:$0]  %s305, 256, %s307, [#allocation9], 64, 64, 4
        $region28: #{tpu_custom_call.1} parent=11 // pred_fallthru
          _
        // Predicated region
        $region29: #{tpu_custom_call.1} parent=11 // pred_check
          %p313 = pneg %p171
        $region30: #{tpu_custom_call.1} parent=11 // pred_check_branch
          %315 = sbr.rel (%p313) target = $region32
        $region31: #{tpu_custom_call.1} parent=11 // pred_region
          %317 = vsyncadd [#allocation9], 0
          %s318 = sshll.u32 %s5, 4
          %s319 = int_to_ptr.hbm [resolvable:$true] %s318
          %s320 = sshll.u32 [#allocation10], 4
          %s321 = int_to_ptr.vmem [resolvable:$true] %s320
          %326 = dma.hbm_to_vmem [thread:$0]  %s319, 256, %s321, [#allocation9], 64, 64, 4
        $region32: #{tpu_custom_call.1} parent=11 // pred_fallthru
          _
      $region12: #{tpu_custom_call.1} parent=5 // pred_fallthru
        _
      %p327 = scmp.lt.s32.totalorder %s26, 2
      // Predicated region
      $region33: #{tpu_custom_call.1} parent=5 // pred_check
        %p328 = pneg %p327
      $region34: #{tpu_custom_call.1} parent=5 // pred_check_branch
        %330 = sbr.rel (%p328) target = $region36
      $region35: #{tpu_custom_call.1} parent=5 // pred_region
        // Predicated region
        $region37: #{tpu_custom_call.1} parent=35 // pred_check
          %p331 = pneg %p60
        $region38: #{tpu_custom_call.1} parent=35 // pred_check_branch
          %333 = sbr.rel (%p331) target = $region40
        $region39: #{tpu_custom_call.1} parent=35 // pred_region
          %s334 = sand.u32 %s50, 1
          %s335 = scalar_lea.sflag [#allocation3], %s334
          %s336 = sand.u32 %s50, 1
          %s337 = smul.addr %s336, 4
          %s338 = scalar_lea.vmem [#allocation2], %s337
          %340 = vsyncadd %s335, 0
          %s341 = sadd.s32 %s34, %s33
          %s342 = smul.addr %s341, 4
          %s343 = scalar_lea.hbm %s0, %s342
          %s345 = sshll.u32 %s343, 4
          %s346 = int_to_ptr.hbm [resolvable:$true] %s345
          %s347 = sshll.u32 %s338, 4
          %s348 = int_to_ptr.vmem [resolvable:$true] %s347
          %350 = dma.hbm_to_vmem [thread:$0]  %s346, 64, %s348, %s335
        $region40: #{tpu_custom_call.1} parent=35 // pred_fallthru
          _
      $region36: #{tpu_custom_call.1} parent=5 // pred_fallthru
        _
      %p351 = scmp.le.s32.totalorder 1, %s26
      %p352 = scmp.lt.s32.totalorder %s26, 3
      %p353 = pnand %p351, %p352
      %p354 = pneg %p353
      // Predicated region
      $region41: #{tpu_custom_call.1} parent=5 // pred_check
        _
      $region42: #{tpu_custom_call.1} parent=5 // pred_check_branch
        %356 = sbr.rel (%p353) target = $region44
      $region43: #{tpu_custom_call.1} parent=5 // pred_region
        %s357 = ssub.s32 %s26, 1
        %s358 = sand.u32 %s53, 1
        %s359 = scalar_lea.sflag [#allocation3], %s358
        %s360 = sand.u32 %s53, 1
        %s361 = smul.addr %s360, 4
        %s362 = scalar_lea.vmem [#allocation2], %s361
        // Predicated region
        $region45: #{tpu_custom_call.1} parent=43 // pred_check
          %p363 = pneg %p66
        $region46: #{tpu_custom_call.1} parent=43 // pred_check_branch
          %365 = sbr.rel (%p363) target = $region48
        $region47: #{tpu_custom_call.1} parent=43 // pred_region
          %367 = dma.done %s359, 64
        $region48: #{tpu_custom_call.1} parent=43 // pred_fallthru
          _
        // Predicated region
        $region49: #{tpu_custom_call.1} parent=43 // pred_check
          %p368 = pneg %p87
        $region50: #{tpu_custom_call.1} parent=43 // pred_check_branch
          %370 = sbr.rel (%p368) target = $region52
        $region51: #{tpu_custom_call.1} parent=43 // pred_region
          %372 = dma.done [#allocation6], 16
        $region52: #{tpu_custom_call.1} parent=43 // pred_fallthru
          _
        // Predicated region
        $region53: #{tpu_custom_call.1} parent=43 // pred_check
          %p373 = pneg %p129
        $region54: #{tpu_custom_call.1} parent=43 // pred_check_branch
          %375 = sbr.rel (%p373) target = $region56
        $region55: #{tpu_custom_call.1} parent=43 // pred_region
          %377 = dma.done [#allocation6], 256
        $region56: #{tpu_custom_call.1} parent=43 // pred_fallthru
          _
        // Predicated region
        $region57: #{tpu_custom_call.1} parent=43 // pred_check
          %p378 = pneg %p150
        $region58: #{tpu_custom_call.1} parent=43 // pred_check_branch
          %380 = sbr.rel (%p378) target = $region60
        $region59: #{tpu_custom_call.1} parent=43 // pred_region
          %382 = dma.done [#allocation9], 256
        $region60: #{tpu_custom_call.1} parent=43 // pred_fallthru
          _
        // Predicated region
        $region61: #{tpu_custom_call.1} parent=43 // pred_check
          %p383 = pneg %p171
        $region62: #{tpu_custom_call.1} parent=43 // pred_check_branch
          %385 = sbr.rel (%p383) target = $region64
        $region63: #{tpu_custom_call.1} parent=43 // pred_region
          %387 = dma.done [#allocation9], 256
        $region64: #{tpu_custom_call.1} parent=43 // pred_fallthru
          _
        %s388 = sand.u32 %s53, 1
        %s389 = scalar_lea.sflag [#allocation3], %s388
        %s390 = sand.u32 %s53, 1
        %s391 = smul.addr %s390, 4
        %s392 = scalar_lea.vmem [#allocation2], %s391
        %p393 = pneg %p66
        %p394 = pneg %p63
        %p395 = pneg %p87
        %p396 = pneg %p84
        %p397 = pneg %p108
        %p398 = pneg %p105
        %p399 = pneg %p129
        %p400 = pneg %p126
        %p401 = pneg %p150
        %p402 = pneg %p147
        %p403 = pneg %p171
        %p404 = pneg %p168
        %p405 = pneg %p199
        %p406 = pneg %p196
        %s407 = sand.u32 %s186, 1
        %s408 = scalar_lea.sflag [#allocation4], %s407
        %s409 = sand.u32 %s186, 1
        %s410 = smul.addr %s409, 8
        %s411 = scalar_lea.vmem [#allocation11], %s410
        %p412 = pneg %p227
        %p413 = pneg %p224
        %s414 = sand.u32 %s31, 1
        %s415 = scalar_lea.sflag [#allocation13], %s414
        %s416 = sand.u32 %s214, 1
        %s417 = smul.addr %s416, 8
        %s418 = scalar_lea.vmem [#allocation12], %s417
        %p419 = pneg %p255
        %p420 = pneg %p252
        %s421 = sand.u32 %s31, 1
        %s422 = scalar_lea.sflag [#allocation13], %s421
        %s423 = sand.u32 %s242, 1
        %s424 = smul.addr %s423, 8
        %s425 = scalar_lea.vmem [#allocation14], %s424
        %v427 = vld [vmem:[%s362] sm:$0xf]
        %v428 = vunpack.c.l.bf16 %v427
        %v429 = vld [vmem:[#allocation5] sm:$0x1]
        %v430 = vld [vmem:[%s2] sm:$0x1]
        %vm431 = vcmask 261120
        %v432 = vsel %vm431, %v428, 0.0
        %433 = vadd.xlane.f32.xlu0 %v432
        %v434 = vpop.xlane.xlu0 %433
        %v435 = vrcp.pop 32.0
        %v436 = vmul.f32 32.0, %v435
        %v437 = vsub.f32 1.0, %v436
        %v438 = vmul.f32 %v435, %v437
        %v439 = vadd.f32 %v435, %v438
        %vm440 = vweird.f32 %v435
        %v441 = vsel %vm440, %v435, %v439
        %v442 = vmul.f32 %v434, %v441
        %v443 = vsub.f32 %v428, %v442
        %v444 = vmul.f32 %v443, %v443
        %v445 = vsel %vm431, %v444, 0.0
        %446 = vadd.xlane.f32.xlu0 %v445
        %v447 = vpop.xlane.xlu0 %446
        %v448 = vmul.f32 %v447, %v441
        %v449 = vadd.f32 %v448, 1e-05
        %v450 = vrsqrt.pop %v449
        %v451 = vmul.f32 %v450, %v449
        %v452 = vmul.f32 %v451, %v450
        %v453 = vmul.f32 0.5, %v452
        %v454 = vsub.f32 1.5, %v453
        %v455 = vmul.f32 %v450, %v454
        %vm456 = vweird.f32 %v449
        %vm457 = vweird.f32 %v450
        %vm458 = vmor %vm456, %vm457
        %v459 = vsel %vm458, %v450, %v455
        %v460 = vmul.f32 %v443, %v459
        %v462 = vperm.slane %v429, 0
        %v464 = vmul.f32 %v460, %v462
        %v466 = vperm.slane %v430, 0
        %v468 = vadd.f32 %v464, %v466
        %v469 = vpack.c.bf16 %v468, %v468
        %v470 = vld [vmem:[#allocation7] sm:$0xf]
        %v471 = vld [vmem:[#allocation7 + $0x4] sm:$0xf]
        %v472 = vld [vmem:[#allocation7 + $0x8] sm:$0xf]
        %v473 = vld [vmem:[#allocation7 + $0xc] sm:$0xf]
        %v478 = vunpack.c.l.b16 %v470
        %v479 = vunpack.c.l.b16 %v471
        %v480 = vunpack.c.l.b16 %v472
        %v481 = vunpack.c.l.b16 %v473
        %v482 = vpack.c.b16 %v479, %v478
        %v483 = vpack.c.b16 %v481, %v480
        %v487 = vsel %vm431, %v469, 0
        %489 = vmatpush.bf16.msra.mxu0 0
        %490 = vmatpush.bf16.msra.mxu0 0
        %491 = vmatpush.bf16.msra.mxu0 0
        %492 = vmatpush.bf16.msra.mxu0 0
        %493 = vmatpush.bf16.msra.mxu0 0
        %494 = vmatpush.bf16.msra.mxu0 0
        %495 = vmatpush.bf16.msra.mxu0 %v483
        %496 = vmatpush.bf16.msra.mxu0 %v482
        %497 = vmatmul.bf16.gmra.mxu0 %v487
        %v498 = vpop.f32.mrf.mxu0
        %v499 = vadd.f32 0.0, %v498
        %v500 = vpop.f32.mrf.mxu0
        %501 = vdwg.mxu0
        %v502 = vmul.f32 %v499, 0.25
        %v503 = vpack.c.bf16 %v502, %v502
        %v504 = vld [vmem:[#allocation8] sm:$0xf]
        %v505 = vld [vmem:[#allocation8 + $0x4] sm:$0xf]
        %v506 = vld [vmem:[#allocation8 + $0x8] sm:$0xf]
        %v507 = vld [vmem:[#allocation8 + $0xc] sm:$0xf]
        %v512 = vunpack.c.l.b16 %v504
        %v513 = vunpack.c.l.b16 %v505
        %v514 = vunpack.c.l.b16 %v506
        %v515 = vunpack.c.l.b16 %v507
        %v516 = vpack.c.b16 %v513, %v512
        %v517 = vpack.c.b16 %v515, %v514
        %520 = vmatpush.bf16.msra.mxu0 0
        %521 = vmatpush.bf16.msra.mxu0 0
        %522 = vmatpush.bf16.msra.mxu0 0
        %523 = vmatpush.bf16.msra.mxu0 0
        %524 = vmatpush.bf16.msra.mxu0 0
        %525 = vmatpush.bf16.msra.mxu0 0
        %526 = vmatpush.bf16.msra.mxu0 %v517
        %527 = vmatpush.bf16.msra.mxu0 %v516
        %528 = vmatmul.bf16.gmra.mxu0 %v487
        %v529 = vpop.f32.mrf.mxu0
        %v530 = vadd.f32 0.0, %v529
        %v531 = vpop.f32.mrf.mxu0
        %532 = vdwg.mxu0
        %v533 = vpack.c.bf16 %v530, %v530
        %v534 = vld [vmem:[#allocation10] sm:$0xf]
        %v535 = vld [vmem:[#allocation10 + $0x4] sm:$0xf]
        %v536 = vld [vmem:[#allocation10 + $0x8] sm:$0xf]
        %v537 = vld [vmem:[#allocation10 + $0xc] sm:$0xf]
        %v542 = vunpack.c.l.b16 %v534
        %v543 = vunpack.c.l.b16 %v535
        %v544 = vunpack.c.l.b16 %v536
        %v545 = vunpack.c.l.b16 %v537
        %v546 = vpack.c.b16 %v543, %v542
        %v547 = vpack.c.b16 %v545, %v544
        %550 = vmatpush.bf16.msra.mxu0 0
        %551 = vmatpush.bf16.msra.mxu0 0
        %552 = vmatpush.bf16.msra.mxu0 0
        %553 = vmatpush.bf16.msra.mxu0 0
        %554 = vmatpush.bf16.msra.mxu0 0
        %555 = vmatpush.bf16.msra.mxu0 0
        %556 = vmatpush.bf16.msra.mxu0 %v547
        %557 = vmatpush.bf16.msra.mxu0 %v546
        %558 = vmatmul.bf16.gmra.mxu0 %v487
        %v559 = vpop.f32.mrf.mxu0
        %v560 = vadd.f32 0.0, %v559
        %v561 = vpop.f32.mrf.mxu0
        %562 = vdwg.mxu0
        %v563 = vpack.c.bf16 %v560, %v560
        %vm564 = vcmask 125952
        %565 = vst.msk [vmem:[%s411] sm:$0xf] %vm564, %v503
        %566 = vst.msk [vmem:[%s418] sm:$0xf] %vm564, %v533
        %567 = vst.msk [vmem:[%s425] sm:$0xf] %vm564, %v563
        %569 = vrot.lane.b32.xlu0 %v503, 112
        %v570 = vpop.permute.xlu0 %569
        %s572 = scalar_lea.vmem %s411, 4 [#allocation11]
        %573 = vst.msk [vmem:[%s572] sm:$0xf] %vm564, %v570
        %575 = vrot.lane.b32.xlu0 %v533, 112
        %v576 = vpop.permute.xlu0 %575
        %s578 = scalar_lea.vmem %s418, 4 [#allocation12]
        %579 = vst.msk [vmem:[%s578] sm:$0xf] %vm564, %v576
        %581 = vrot.lane.b32.xlu0 %v563, 112
        %v582 = vpop.permute.xlu0 %581
        %s584 = scalar_lea.vmem %s425, 4 [#allocation14]
        %585 = vst.msk [vmem:[%s584] sm:$0xf] %vm564, %v582
        %s586 = sand.u32 %s186, 1
        %s587 = scalar_lea.sflag [#allocation4], %s586
        %s588 = sand.u32 %s186, 1
        %s589 = smul.addr %s588, 8
        %s590 = scalar_lea.vmem [#allocation11], %s589
        %s591 = sand.u32 %s31, 1
        %s592 = scalar_lea.sflag [#allocation13], %s591
        %s593 = sand.u32 %s214, 1
        %s594 = smul.addr %s593, 8
        %s595 = scalar_lea.vmem [#allocation12], %s594
        %s596 = sand.u32 %s31, 1
        %s597 = scalar_lea.sflag [#allocation13], %s596
        %s598 = sand.u32 %s242, 1
        %s599 = smul.addr %s598, 8
        %s600 = scalar_lea.vmem [#allocation14], %s599
        // Predicated region
        $region65: #{tpu_custom_call.1} parent=43 // pred_check
          %p601 = pneg %p196
        $region66: #{tpu_custom_call.1} parent=43 // pred_check_branch
          %603 = sbr.rel (%p601) target = $region68
        $region67: #{tpu_custom_call.1} parent=43 // pred_region
          %605 = vsyncadd %s587, 0
          %s606 = smul.addr %s35, 2
          %s607 = sadd.s32 %s36, %s606
          %s608 = smul.addr %s607, 4
          %s609 = scalar_lea.hbm %s6, %s608
          %s610 = sshll.u32 %s590, 4
          %s611 = int_to_ptr.vmem [resolvable:$true] %s610
          %s612 = sshll.u32 %s609, 4
          %s613 = int_to_ptr.hbm [resolvable:$true] %s612
          %618 = dma.vmem_to_hbm [thread:$0]  %s611, 128, %s613, %s587, 64, 64, 4
        $region68: #{tpu_custom_call.1} parent=43 // pred_fallthru
          _
        // Predicated region
        $region69: #{tpu_custom_call.1} parent=43 // pred_check
          %p619 = pneg %p224
        $region70: #{tpu_custom_call.1} parent=43 // pred_check_branch
          %621 = sbr.rel (%p619) target = $region72
        $region71: #{tpu_custom_call.1} parent=43 // pred_region
          %623 = vsyncadd %s592, 0
          %s624 = smul.addr %s35, 2
          %s625 = sadd.s32 %s36, %s624
          %s626 = smul.addr %s625, 4
          %s627 = scalar_lea.hbm %s7, %s626
          %s628 = sshll.u32 %s595, 4
          %s629 = int_to_ptr.vmem [resolvable:$true] %s628
          %s630 = sshll.u32 %s627, 4
          %s631 = int_to_ptr.hbm [resolvable:$true] %s630
          %636 = dma.vmem_to_hbm [thread:$0]  %s629, 128, %s631, %s592, 64, 64, 4
        $region72: #{tpu_custom_call.1} parent=43 // pred_fallthru
          _
        // Predicated region
        $region73: #{tpu_custom_call.1} parent=43 // pred_check
          %p637 = pneg %p252
        $region74: #{tpu_custom_call.1} parent=43 // pred_check_branch
          %639 = sbr.rel (%p637) target = $region76
        $region75: #{tpu_custom_call.1} parent=43 // pred_region
          %641 = vsyncadd %s597, 0
          %s642 = smul.addr %s35, 2
          %s643 = sadd.s32 %s36, %s642
          %s644 = smul.addr %s643, 4
          %s645 = scalar_lea.hbm %s8, %s644
          %s646 = sshll.u32 %s600, 4
          %s647 = int_to_ptr.vmem [resolvable:$true] %s646
          %s648 = sshll.u32 %s645, 4
          %s649 = int_to_ptr.hbm [resolvable:$true] %s648
          %654 = dma.vmem_to_hbm [thread:$0]  %s647, 128, %s649, %s597, 64, 64, 4
        $region76: #{tpu_custom_call.1} parent=43 // pred_fallthru
          _
      $region44: #{tpu_custom_call.1} parent=5 // pred_fallthru
        _
      %p655 = scmp.le.s32.totalorder 2, %s26
      // Predicated region
      $region77: #{tpu_custom_call.1} parent=5 // pred_check
        %p656 = pneg %p655
      $region78: #{tpu_custom_call.1} parent=5 // pred_check_branch
        %658 = sbr.rel (%p656) target = $region80
      $region79: #{tpu_custom_call.1} parent=5 // pred_region
        %s659 = ssub.s32 %s26, 2
        // Predicated region
        $region81: #{tpu_custom_call.1} parent=79 // pred_check
          %p660 = pneg %p202
        $region82: #{tpu_custom_call.1} parent=79 // pred_check_branch
          %662 = sbr.rel (%p660) target = $region84
        $region83: #{tpu_custom_call.1} parent=79 // pred_region
          %s663 = sand.u32 %s187, 1
          %s664 = scalar_lea.sflag [#allocation4], %s663
          %s665 = sand.u32 %s187, 1
          %s666 = smul.addr %s665, 8
          %s667 = scalar_lea.vmem [#allocation11], %s666
          %669 = dma.done %s664, 128
        $region84: #{tpu_custom_call.1} parent=79 // pred_fallthru
          _
        // Predicated region
        $region85: #{tpu_custom_call.1} parent=79 // pred_check
          %p670 = pneg %p230
        $region86: #{tpu_custom_call.1} parent=79 // pred_check_branch
          %672 = sbr.rel (%p670) target = $region88
        $region87: #{tpu_custom_call.1} parent=79 // pred_region
          %s673 = sand.u32 %s32, 1
          %s674 = scalar_lea.sflag [#allocation13], %s673
          %s675 = sand.u32 %s215, 1
          %s676 = smul.addr %s675, 8
          %s677 = scalar_lea.vmem [#allocation12], %s676
          %679 = dma.done %s674, 128
        $region88: #{tpu_custom_call.1} parent=79 // pred_fallthru
          _
        // Predicated region
        $region89: #{tpu_custom_call.1} parent=79 // pred_check
          %p680 = pneg %p258
        $region90: #{tpu_custom_call.1} parent=79 // pred_check_branch
          %682 = sbr.rel (%p680) target = $region92
        $region91: #{tpu_custom_call.1} parent=79 // pred_region
          %s683 = sand.u32 %s32, 1
          %s684 = scalar_lea.sflag [#allocation13], %s683
          %s685 = sand.u32 %s243, 1
          %s686 = smul.addr %s685, 8
          %s687 = scalar_lea.vmem [#allocation14], %s686
          %689 = dma.done %s684, 128
        $region92: #{tpu_custom_call.1} parent=79 // pred_fallthru
          _
      $region80: #{tpu_custom_call.1} parent=5 // pred_fallthru
        _
    $region6: #{tpu_custom_call.1} parent=1 // loop_footer
      %s30 = sadd.s32 1, %s26
    $region7: #{tpu_custom_call.1} parent=1 // loop_footer_branch
      %25 = sbr.rel target = $region3
    $region8: #{tpu_custom_call.1} parent=1 // loop_exit
      _
    %690 = vsyncpa [#allocation3], 1
    %s691 = scalar_lea.sflag [#allocation3], 1
    %692 = vsyncpa %s691, 1
    %693 = vsyncpa [#allocation6], 1
    %694 = vsyncpa [#allocation9], 1
    %695 = vsyncpa [#allocation4], 1
    %s696 = scalar_lea.sflag [#allocation4], 1
    %697 = vsyncpa %s696, 1
    %698 = vsyncpa [#allocation13], 1
    %s699 = scalar_lea.sflag [#allocation13], 1
    %700 = vsyncpa %s699, 1

// kernel: tpu_custom_call.1
$region0: #{tpu_custom_call.1}
  #allocation0 [shape = 'u32[]', space=smem, size = 0x4, offset = 0x4, fixed_abs, tag = 'smem constant byte address 0x4 - core index']
  #allocation1 [shape = 'u32[72,128]{1,0:T(1,128)}', space=vmem, size = 0x9000, scoped, tag = 'internal scratch']
  %s0 = inlined_call_operand.hbm [shape: bf16[2,8,32], index: 0, kind: input, shape index: {}]
  %s1 = inlined_call_operand.hbm [shape: f32[1,32], index: 1, kind: input, shape index: {}]
  %s2 = inlined_call_operand.vmem [shape: f32[1,32], index: 2, kind: input, shape index: {}]
  %s3 = inlined_call_operand.hbm [shape: bf16[32,32], index: 3, kind: input, shape index: {}]
  %s4 = inlined_call_operand.hbm [shape: bf16[32,32], index: 4, kind: input, shape index: {}]
  %s5 = inlined_call_operand.hbm [shape: bf16[32,32], index: 5, kind: input, shape index: {}]
  %s6 = inlined_call_operand.hbm [shape: bf16[2,2,8,16], index: 6, kind: output, shape index: {0}]
  %s7 = inlined_call_operand.hbm [shape: bf16[2,2,8,16], index: 7, kind: output, shape index: {1}]
  %s8 = inlined_call_operand.hbm [shape: bf16[2,2,8,16], index: 8, kind: output, shape index: {2}]
  %9 = xla_tuple %s6, %s7, %s8
  %s10 = sld [smem:[#allocation0]]
  $region93: #{tpu_custom_call.1} parent=0
    _
  %s12 = ssub.s32 1, %s10
  %s13 = scalar_select 0, %s12, %s10
  $region1: #{tpu_custom_call.1} parent=0
    #allocation2 [shape = 'u8[4096]{0}', space=vmem, size = 0x1000, scoped, tag = 'input window, operand 0']
    #allocation3 [shape = 's32[2]{0}', space=sflag, size = 0x8, scoped, tag = 'scoped memory for tpu_custom_call.1']
    #allocation4 [shape = 's32[2]{0}', space=sflag, size = 0x8, scoped, tag = 'scoped memory for tpu_custom_call.1']
    #allocation5 [shape = 'u8[512]{0}', space=vmem, size = 0x400, scoped, tag = 'input window, operand 1, single buffered']
    #allocation6 [shape = 's32[1]{0}', space=sflag, size = 0x4, scoped, tag = 'scoped memory for tpu_custom_call.1']
    #allocation7 [shape = 'u8[8192]{0}', space=vmem, size = 0x2000, scoped, tag = 'input window, operand 3, single buffered']
    #allocation8 [shape = 'u8[8192]{0}', space=vmem, size = 0x2000, scoped, tag = 'input window, operand 4, single buffered']
    #allocation9 [shape = 's32[1]{0}', space=sflag, size = 0x4, scoped, tag = 'scoped memory for tpu_custom_call.1']
    #allocation10 [shape = 'u8[8192]{0}', space=vmem, size = 0x2000, scoped, tag = 'input window, operand 5, single buffered']
    #allocation11 [shape = 'u8[8192]{0}', space=vmem, size = 0x2000, scoped, tag = 'output window, operand 0']
    #allocation12 [shape = 'u8[8192]{0}', space=vmem, size = 0x2000, scoped, tag = 'output window, operand 1']
    #allocation13 [shape = 's32[2]{0}', space=sflag, size = 0x8, scoped, tag = 'scoped memory for tpu_custom_call.1']
    #allocation14 [shape = 'u8[8192]{0}', space=vmem, size = 0x2000, scoped, tag = 'output window, operand 2']
    %14 = vsyncpa [#allocation3], 0
    %s15 = scalar_lea.sflag [#allocation3], 1
    %16 = vsyncpa %s15, 0
    %17 = vsyncpa [#allocation6], 0
    %18 = vsyncpa [#allocation9], 0
    %19 = vsyncpa [#allocation4], 0
    %s20 = scalar_lea.sflag [#allocation4], 1
    %21 = vsyncpa %s20, 0
    %22 = vsyncpa [#allocation13], 0
    %s23 = scalar_lea.sflag [#allocation13], 1
    %24 = vsyncpa %s23, 0
    loop: start=0, step=1, limit=4
    $region2: #{tpu_custom_call.1} parent=1 // loop_pre_header
      _
    $region3: #{tpu_custom_call.1} parent=1 // loop_header
      %s26 = sphi 0, %s30
      %p27 = scmp.ge.s32.totalorder %s26, 4
      %s33 = sphi 0, %s45
      %s34 = sphi 0, %s41
      %s35 = sphi 0, %s33
      %s36 = sphi 0, %s34
      %s37 = sphi 0, %s35
      %s38 = sphi 0, %s36
      %s50 = sphi 0, %s52
      %s53 = sphi 0, %s50
      %s54 = sphi 0, %s53
      %s70 = sphi 0, %s54
      %s74 = sphi 0, %s74
      %s76 = sphi 0, %s74
      %s77 = sphi 0, %s76
      %s91 = sphi 0, %s77
      %s95 = sphi 0, %s95
      %s97 = sphi 0, %s95
      %s98 = sphi 0, %s97
      %s112 = sphi 0, %s98
      %s116 = sphi 0, %s116
      %s118 = sphi 0, %s116
      %s119 = sphi 0, %s118
      %s133 = sphi 0, %s119
      %s137 = sphi 0, %s137
      %s139 = sphi 0, %s137
      %s140 = sphi 0, %s139
      %s154 = sphi 0, %s140
      %s158 = sphi 0, %s158
      %s160 = sphi 0, %s158
      %s161 = sphi 0, %s160
      %s175 = sphi 0, %s161
      %s183 = sphi 0, %s185
      %s186 = sphi 0, %s183
      %s187 = sphi 0, %s186
      %s203 = sphi 0, %s187
      %s211 = sphi 0, %s213
      %s214 = sphi 0, %s211
      %s215 = sphi 0, %s214
      %s231 = sphi 0, %s215
      %s239 = sphi 0, %s241
      %s242 = sphi 0, %s239
      %s243 = sphi 0, %s242
      %s259 = sphi 0, %s243
    $region4: #{tpu_custom_call.1} parent=1 // loop_header_branch
      %29 = sbr.rel (%p27) target = $region8
    $region5: #{tpu_custom_call.1} parent=1 // loop_body
      %s31 = ssub.s32 %s26, 1
      %s32 = ssub.s32 %s26, 2
      %s39 = sadd.s32 1, %s34
      %p40 = scmp.ge.s32.totalorder %s39, 1
      %s41 = scalar_select %p40, 0, %s39
      %s42 = sadd.s32 1, %s33
      %s43 = scalar_select %p40, %s42, %s33
      %p44 = scmp.ge.s32.totalorder %s43, 2
      %s45 = scalar_select %p44, 0, %s43
      %s46 = ssub.s32 %s33, %s45
      %s47 = ssub.s32 %s34, %s41
      %s48 = sor.u32 %s46, %s47
      %p49 = scmp.eq.s32.totalorder %s48, 0
      %s51 = sadd.s32 %s50, 1
      %s52 = scalar_select %p49, %s50, %s51
      %p55 = pneg %p49
      %p56 = scmp.eq.s32.totalorder %s26, 1
      %p57 = por %p55, %p56
      %p58 = scmp.ne.s32.totalorder %s50, %s53
      %p59 = scmp.eq.s32.totalorder %s26, 0
      %p60 = por %p58, %p59
      %p61 = scmp.ne.s32.totalorder %s50, %s53
      %p62 = scmp.eq.s32.totalorder %s31, 1
      %p63 = por %p61, %p62
      %p64 = scmp.ne.s32.totalorder %s53, %s54
      %p65 = scmp.eq.s32.totalorder %s31, 0
      %p66 = por %p64, %p65
      %p67 = scmp.ne.s32.totalorder %s53, %s54
      %p68 = scmp.eq.s32.totalorder %s32, 1
      %p69 = por %p67, %p68
      %p71 = scmp.ne.s32.totalorder %s54, %s70
      %p72 = scmp.eq.s32.totalorder %s32, 0
      %p73 = por %p71, %p72
      %s75 = sadd.s32 %s74, 1
      %p78 = scmp.eq.s32.totalorder %s26, 1
      %p79 = scmp.ne.s32.totalorder %s74, %s76
      %p80 = scmp.eq.s32.totalorder %s26, 0
      %p81 = por %p79, %p80
      %p82 = scmp.ne.s32.totalorder %s74, %s76
      %p83 = scmp.eq.s32.totalorder %s31, 1
      %p84 = por %p82, %p83
      %p85 = scmp.ne.s32.totalorder %s76, %s77
      %p86 = scmp.eq.s32.totalorder %s31, 0
      %p87 = por %p85, %p86
      %p88 = scmp.ne.s32.totalorder %s76, %s77
      %p89 = scmp.eq.s32.totalorder %s32, 1
      %p90 = por %p88, %p89
      %p92 = scmp.ne.s32.totalorder %s77, %s91
      %p93 = scmp.eq.s32.totalorder %s32, 0
      %p94 = por %p92, %p93
      %s96 = sadd.s32 %s95, 1
      %p99 = scmp.eq.s32.totalorder %s26, 1
      %p100 = scmp.ne.s32.totalorder %s95, %s97
      %p101 = scmp.eq.s32.totalorder %s26, 0
      %p102 = por %p100, %p101
      %p103 = scmp.ne.s32.totalorder %s95, %s97
      %p104 = scmp.eq.s32.totalorder %s31, 1
      %p105 = por %p103, %p104
      %p106 = scmp.ne.s32.totalorder %s97, %s98
      %p107 = scmp.eq.s32.totalorder %s31, 0
      %p108 = por %p106, %p107
      %p109 = scmp.ne.s32.totalorder %s97, %s98
      %p110 = scmp.eq.s32.totalorder %s32, 1
      %p111 = por %p109, %p110
      %p113 = scmp.ne.s32.totalorder %s98, %s112
      %p114 = scmp.eq.s32.totalorder %s32, 0
      %p115 = por %p113, %p114
      %s117 = sadd.s32 %s116, 1
      %p120 = scmp.eq.s32.totalorder %s26, 1
      %p121 = scmp.ne.s32.totalorder %s116, %s118
      %p122 = scmp.eq.s32.totalorder %s26, 0
      %p123 = por %p121, %p122
      %p124 = scmp.ne.s32.totalorder %s116, %s118
      %p125 = scmp.eq.s32.totalorder %s31, 1
      %p126 = por %p124, %p125
      %p127 = scmp.ne.s32.totalorder %s118, %s119
      %p128 = scmp.eq.s32.totalorder %s31, 0
      %p129 = por %p127, %p128
      %p130 = scmp.ne.s32.totalorder %s118, %s119
      %p131 = scmp.eq.s32.totalorder %s32, 1
      %p132 = por %p130, %p131
      %p134 = scmp.ne.s32.totalorder %s119, %s133
      %p135 = scmp.eq.s32.totalorder %s32, 0
      %p136 = por %p134, %p135
      %s138 = sadd.s32 %s137, 1
      %p141 = scmp.eq.s32.totalorder %s26, 1
      %p142 = scmp.ne.s32.totalorder %s137, %s139
      %p143 = scmp.eq.s32.totalorder %s26, 0
      %p144 = por %p142, %p143
      %p145 = scmp.ne.s32.totalorder %s137, %s139
      %p146 = scmp.eq.s32.totalorder %s31, 1
      %p147 = por %p145, %p146
      %p148 = scmp.ne.s32.totalorder %s139, %s140
      %p149 = scmp.eq.s32.totalorder %s31, 0
      %p150 = por %p148, %p149
      %p151 = scmp.ne.s32.totalorder %s139, %s140
      %p152 = scmp.eq.s32.totalorder %s32, 1
      %p153 = por %p151, %p152
      %p155 = scmp.ne.s32.totalorder %s140, %s154
      %p156 = scmp.eq.s32.totalorder %s32, 0
      %p157 = por %p155, %p156
      %s159 = sadd.s32 %s158, 1
      %p162 = scmp.eq.s32.totalorder %s26, 1
      %p163 = scmp.ne.s32.totalorder %s158, %s160
      %p164 = scmp.eq.s32.totalorder %s26, 0
      %p165 = por %p163, %p164
      %p166 = scmp.ne.s32.totalorder %s158, %s160
      %p167 = scmp.eq.s32.totalorder %s31, 1
      %p168 = por %p166, %p167
      %p169 = scmp.ne.s32.totalorder %s160, %s161
      %p170 = scmp.eq.s32.totalorder %s31, 0
      %p171 = por %p169, %p170
      %p172 = scmp.ne.s32.totalorder %s160, %s161
      %p173 = scmp.eq.s32.totalorder %s32, 1
      %p174 = por %p172, %p173
      %p176 = scmp.ne.s32.totalorder %s161, %s175
      %p177 = scmp.eq.s32.totalorder %s32, 0
      %p178 = por %p176, %p177
      %s179 = ssub.s32 %s33, %s45
      %s180 = ssub.s32 %s34, %s41
      %s181 = sor.u32 %s179, %s180
      %p182 = scmp.eq.s32.totalorder %s181, 0
      %s184 = sadd.s32 %s183, 1
      %s185 = scalar_select %p182, %s183, %s184
      %p188 = pneg %p182
      %p189 = scmp.eq.s32.totalorder %s26, 1
      %p190 = por %p188, %p189
      %p191 = scmp.ne.s32.totalorder %s183, %s186
      %p192 = scmp.eq.s32.totalorder %s26, 0
      %p193 = por %p191, %p192
      %p194 = scmp.ne.s32.totalorder %s183, %s186
      %p195 = scmp.eq.s32.totalorder %s31, 1
      %p196 = por %p194, %p195
      %p197 = scmp.ne.s32.totalorder %s186, %s187
      %p198 = scmp.eq.s32.totalorder %s31, 0
      %p199 = por %p197, %p198
      %p200 = scmp.ne.s32.totalorder %s186, %s187
      %p201 = scmp.eq.s32.totalorder %s32, 1
      %p202 = por %p200, %p201
      %p204 = scmp.ne.s32.totalorder %s187, %s203
      %p205 = scmp.eq.s32.totalorder %s32, 0
      %p206 = por %p204, %p205
      %s207 = ssub.s32 %s33, %s45
      %s208 = ssub.s32 %s34, %s41
      %s209 = sor.u32 %s207, %s208
      %p210 = scmp.eq.s32.totalorder %s209, 0
      %s212 = sadd.s32 %s211, 1
      %s213 = scalar_select %p210, %s211, %s212
      %p216 = pneg %p210
      %p217 = scmp.eq.s32.totalorder %s26, 1
      %p218 = por %p216, %p217
      %p219 = scmp.ne.s32.totalorder %s211, %s214
      %p220 = scmp.eq.s32.totalorder %s26, 0
      %p221 = por %p219, %p220
      %p222 = scmp.ne.s32.totalorder %s211, %s214
      %p223 = scmp.eq.s32.totalorder %s31, 1
      %p224 = por %p222, %p223
      %p225 = scmp.ne.s32.totalorder %s214, %s215
      %p226 = scmp.eq.s32.totalorder %s31, 0
      %p227 = por %p225, %p226
      %p228 = scmp.ne.s32.totalorder %s214, %s215
      %p229 = scmp.eq.s32.totalorder %s32, 1
      %p230 = por %p228, %p229
      %p232 = scmp.ne.s32.totalorder %s215, %s231
      %p233 = scmp.eq.s32.totalorder %s32, 0
      %p234 = por %p232, %p233
      %s235 = ssub.s32 %s33, %s45
      %s236 = ssub.s32 %s34, %s41
      %s237 = sor.u32 %s235, %s236
      %p238 = scmp.eq.s32.totalorder %s237, 0
      %s240 = sadd.s32 %s239, 1
      %s241 = scalar_select %p238, %s239, %s240
      %p244 = pneg %p238
      %p245 = scmp.eq.s32.totalorder %s26, 1
      %p246 = por %p244, %p245
      %p247 = scmp.ne.s32.totalorder %s239, %s242
      %p248 = scmp.eq.s32.totalorder %s26, 0
      %p249 = por %p247, %p248
      %p250 = scmp.ne.s32.totalorder %s239, %s242
      %p251 = scmp.eq.s32.totalorder %s31, 1
      %p252 = por %p250, %p251
      %p253 = scmp.ne.s32.totalorder %s242, %s243
      %p254 = scmp.eq.s32.totalorder %s31, 0
      %p255 = por %p253, %p254
      %p256 = scmp.ne.s32.totalorder %s242, %s243
      %p257 = scmp.eq.s32.totalorder %s32, 1
      %p258 = por %p256, %p257
      %p260 = scmp.ne.s32.totalorder %s243, %s259
      %p261 = scmp.eq.s32.totalorder %s32, 0
      %p262 = por %p260, %p261
      %p263 = scmp.le.s32.totalorder 1, %s26
      %p264 = scmp.lt.s32.totalorder %s26, 3
      %p265 = pnand %p263, %p264
      %p266 = pneg %p265
      // Predicated region
      $region9: #{tpu_custom_call.1} parent=5 // pred_check
        _
      $region10: #{tpu_custom_call.1} parent=5 // pred_check_branch
        %268 = sbr.rel (%p265) target = $region12
      $region11: #{tpu_custom_call.1} parent=5 // pred_region
        %s269 = ssub.s32 %s26, 1
        // Predicated region
        $region13: #{tpu_custom_call.1} parent=11 // pred_check
          %p270 = pneg %p87
        $region14: #{tpu_custom_call.1} parent=11 // pred_check_branch
          %272 = sbr.rel (%p270) target = $region16
        $region15: #{tpu_custom_call.1} parent=11 // pred_region
          %274 = vsyncadd [#allocation6], 0
          %s276 = sshll.u32 %s1, 4
          %s277 = int_to_ptr.hbm [resolvable:$true] %s276
          %s278 = sshll.u32 [#allocation5], 4
          %s279 = int_to_ptr.vmem [resolvable:$true] %s278
          %281 = dma.hbm_to_vmem [thread:$0]  %s277, 16, %s279, [#allocation6]
        $region16: #{tpu_custom_call.1} parent=11 // pred_fallthru
          _
        // Predicated region
        $region17: #{tpu_custom_call.1} parent=11 // pred_check
          %p282 = pneg %p108
        $region18: #{tpu_custom_call.1} parent=11 // pred_check_branch
          %284 = sbr.rel (%p282) target = $region20
        $region19: #{tpu_custom_call.1} parent=11 // pred_region
          _
        $region20: #{tpu_custom_call.1} parent=11 // pred_fallthru
          _
        // Predicated region
        $region21: #{tpu_custom_call.1} parent=11 // pred_check
          %p285 = pneg %p129
        $region22: #{tpu_custom_call.1} parent=11 // pred_check_branch
          %287 = sbr.rel (%p285) target = $region24
        $region23: #{tpu_custom_call.1} parent=11 // pred_region
          %289 = vsyncadd [#allocation6], 0
          %s290 = sshll.u32 %s3, 4
          %s291 = int_to_ptr.hbm [resolvable:$true] %s290
          %s292 = sshll.u32 [#allocation7], 4
          %s293 = int_to_ptr.vmem [resolvable:$true] %s292
          %298 = dma.hbm_to_vmem [thread:$0]  %s291, 256, %s293, [#allocation6], 64, 64, 4
        $region24: #{tpu_custom_call.1} parent=11 // pred_fallthru
          _
        // Predicated region
        $region25: #{tpu_custom_call.1} parent=11 // pred_check
          %p299 = pneg %p150
        $region26: #{tpu_custom_call.1} parent=11 // pred_check_branch
          %301 = sbr.rel (%p299) target = $region28
        $region27: #{tpu_custom_call.1} parent=11 // pred_region
          %303 = vsyncadd [#allocation9], 0
          %s304 = sshll.u32 %s4, 4
          %s305 = int_to_ptr.hbm [resolvable:$true] %s304
          %s306 = sshll.u32 [#allocation8], 4
          %s307 = int_to_ptr.vmem [resolvable:$true] %s306
          %312 = dma.hbm_to_vmem [thread:$0]  %s305, 256, %s307, [#allocation9], 64, 64, 4
        $region28: #{tpu_custom_call.1} parent=11 // pred_fallthru
          _
        // Predicated region
        $region29: #{tpu_custom_call.1} parent=11 // pred_check
          %p313 = pneg %p171
        $region30: #{tpu_custom_call.1} parent=11 // pred_check_branch
          %315 = sbr.rel (%p313) target = $region32
        $region31: #{tpu_custom_call.1} parent=11 // pred_region
          %317 = vsyncadd [#allocation9], 0
          %s318 = sshll.u32 %s5, 4
          %s319 = int_to_ptr.hbm [resolvable:$true] %s318
          %s320 = sshll.u32 [#allocation10], 4
          %s321 = int_to_ptr.vmem [resolvable:$true] %s320
          %326 = dma.hbm_to_vmem [thread:$0]  %s319, 256, %s321, [#allocation9], 64, 64, 4
        $region32: #{tpu_custom_call.1} parent=11 // pred_fallthru
          _
      $region12: #{tpu_custom_call.1} parent=5 // pred_fallthru
        _
      %p327 = scmp.lt.s32.totalorder %s26, 2
      // Predicated region
      $region33: #{tpu_custom_call.1} parent=5 // pred_check
        %p328 = pneg %p327
      $region34: #{tpu_custom_call.1} parent=5 // pred_check_branch
        %330 = sbr.rel (%p328) target = $region36
      $region35: #{tpu_custom_call.1} parent=5 // pred_region
        // Predicated region
        $region37: #{tpu_custom_call.1} parent=35 // pred_check
          %p331 = pneg %p60
        $region38: #{tpu_custom_call.1} parent=35 // pred_check_branch
          %333 = sbr.rel (%p331) target = $region40
        $region39: #{tpu_custom_call.1} parent=35 // pred_region
          %s334 = sand.u32 %s50, 1
          %s335 = scalar_lea.sflag [#allocation3], %s334
          %s336 = sand.u32 %s50, 1
          %s337 = smul.addr %s336, 4
          %s338 = scalar_lea.vmem [#allocation2], %s337
          %340 = vsyncadd %s335, 0
          %s341 = sadd.s32 %s34, %s33
          %s342 = smul.addr %s341, 4
          %s343 = scalar_lea.hbm %s0, %s342
          %s345 = sshll.u32 %s343, 4
          %s346 = int_to_ptr.hbm [resolvable:$true] %s345
          %s347 = sshll.u32 %s338, 4
          %s348 = int_to_ptr.vmem [resolvable:$true] %s347
          %350 = dma.hbm_to_vmem [thread:$0]  %s346, 64, %s348, %s335
        $region40: #{tpu_custom_call.1} parent=35 // pred_fallthru
          _
      $region36: #{tpu_custom_call.1} parent=5 // pred_fallthru
        _
      %p351 = scmp.le.s32.totalorder 1, %s26
      %p352 = scmp.lt.s32.totalorder %s26, 3
      %p353 = pnand %p351, %p352
      %p354 = pneg %p353
      // Predicated region
      $region41: #{tpu_custom_call.1} parent=5 // pred_check
        _
      $region42: #{tpu_custom_call.1} parent=5 // pred_check_branch
        %356 = sbr.rel (%p353) target = $region44
      $region43: #{tpu_custom_call.1} parent=5 // pred_region
        %s357 = ssub.s32 %s26, 1
        %s358 = sand.u32 %s53, 1
        %s359 = scalar_lea.sflag [#allocation3], %s358
        %s360 = sand.u32 %s53, 1
        %s361 = smul.addr %s360, 4
        %s362 = scalar_lea.vmem [#allocation2], %s361
        // Predicated region
        $region45: #{tpu_custom_call.1} parent=43 // pred_check
          %p363 = pneg %p66
        $region46: #{tpu_custom_call.1} parent=43 // pred_check_branch
          %365 = sbr.rel (%p363) target = $region48
        $region47: #{tpu_custom_call.1} parent=43 // pred_region
          %367 = dma.done %s359, 64
        $region48: #{tpu_custom_call.1} parent=43 // pred_fallthru
          _
        // Predicated region
        $region49: #{tpu_custom_call.1} parent=43 // pred_check
          %p368 = pneg %p87
        $region50: #{tpu_custom_call.1} parent=43 // pred_check_branch
          %370 = sbr.rel (%p368) target = $region52
        $region51: #{tpu_custom_call.1} parent=43 // pred_region
          %372 = dma.done [#allocation6], 16
        $region52: #{tpu_custom_call.1} parent=43 // pred_fallthru
          _
        // Predicated region
        $region53: #{tpu_custom_call.1} parent=43 // pred_check
          %p373 = pneg %p129
        $region54: #{tpu_custom_call.1} parent=43 // pred_check_branch
          %375 = sbr.rel (%p373) target = $region56
        $region55: #{tpu_custom_call.1} parent=43 // pred_region
          %377 = dma.done [#allocation6], 256
        $region56: #{tpu_custom_call.1} parent=43 // pred_fallthru
          _
        // Predicated region
        $region57: #{tpu_custom_call.1} parent=43 // pred_check
          %p378 = pneg %p150
        $region58: #{tpu_custom_call.1} parent=43 // pred_check_branch
          %380 = sbr.rel (%p378) target = $region60
        $region59: #{tpu_custom_call.1} parent=43 // pred_region
          %382 = dma.done [#allocation9], 256
        $region60: #{tpu_custom_call.1} parent=43 // pred_fallthru
          _
        // Predicated region
        $region61: #{tpu_custom_call.1} parent=43 // pred_check
          %p383 = pneg %p171
        $region62: #{tpu_custom_call.1} parent=43 // pred_check_branch
          %385 = sbr.rel (%p383) target = $region64
        $region63: #{tpu_custom_call.1} parent=43 // pred_region
          %387 = dma.done [#allocation9], 256
        $region64: #{tpu_custom_call.1} parent=43 // pred_fallthru
          _
        %s388 = sand.u32 %s53, 1
        %s389 = scalar_lea.sflag [#allocation3], %s388
        %s390 = sand.u32 %s53, 1
        %s391 = smul.addr %s390, 4
        %s392 = scalar_lea.vmem [#allocation2], %s391
        %p393 = pneg %p66
        %p394 = pneg %p63
        %p395 = pneg %p87
        %p396 = pneg %p84
        %p397 = pneg %p108
        %p398 = pneg %p105
        %p399 = pneg %p129
        %p400 = pneg %p126
        %p401 = pneg %p150
        %p402 = pneg %p147
        %p403 = pneg %p171
        %p404 = pneg %p168
        %p405 = pneg %p199
        %p406 = pneg %p196
        %s407 = sand.u32 %s186, 1
        %s408 = scalar_lea.sflag [#allocation4], %s407
        %s409 = sand.u32 %s186, 1
        %s410 = smul.addr %s409, 8
        %s411 = scalar_lea.vmem [#allocation11], %s410
        %p412 = pneg %p227
        %p413 = pneg %p224
        %s414 = sand.u32 %s31, 1
        %s415 = scalar_lea.sflag [#allocation13], %s414
        %s416 = sand.u32 %s214, 1
        %s417 = smul.addr %s416, 8
        %s418 = scalar_lea.vmem [#allocation12], %s417
        %p419 = pneg %p255
        %p420 = pneg %p252
        %s421 = sand.u32 %s31, 1
        %s422 = scalar_lea.sflag [#allocation13], %s421
        %s423 = sand.u32 %s242, 1
        %s424 = smul.addr %s423, 8
        %s425 = scalar_lea.vmem [#allocation14], %s424
        %v427 = vld [vmem:[%s362] sm:$0xf]
        %v428 = vunpack.c.l.bf16 %v427
        %v429 = vld [vmem:[#allocation5] sm:$0x1]
        %v430 = vld [vmem:[%s2] sm:$0x1]
        %vm431 = vcmask 261120
        %v432 = vsel %vm431, %v428, 0.0
        %433 = vadd.xlane.f32.xlu0 %v432
        %v434 = vpop.xlane.xlu0 %433
        %v435 = vrcp.pop 32.0
        %v436 = vmul.f32 32.0, %v435
        %v437 = vsub.f32 1.0, %v436
        %v438 = vmul.f32 %v435, %v437
        %v439 = vadd.f32 %v435, %v438
        %vm440 = vweird.f32 %v435
        %v441 = vsel %vm440, %v435, %v439
        %v442 = vmul.f32 %v434, %v441
        %v443 = vsub.f32 %v428, %v442
        %v444 = vmul.f32 %v443, %v443
        %v445 = vsel %vm431, %v444, 0.0
        %446 = vadd.xlane.f32.xlu0 %v445
        %v447 = vpop.xlane.xlu0 %446
        %v448 = vmul.f32 %v447, %v441
        %v449 = vadd.f32 %v448, 1e-05
        %v450 = vrsqrt.pop %v449
        %v451 = vmul.f32 %v450, %v449
        %v452 = vmul.f32 %v451, %v450
        %v453 = vmul.f32 0.5, %v452
        %v454 = vsub.f32 1.5, %v453
        %v455 = vmul.f32 %v450, %v454
        %vm456 = vweird.f32 %v449
        %vm457 = vweird.f32 %v450
        %vm458 = vmor %vm456, %vm457
        %v459 = vsel %vm458, %v450, %v455
        %v460 = vmul.f32 %v443, %v459
        %v462 = vperm.slane %v429, 0
        %v464 = vmul.f32 %v460, %v462
        %v466 = vperm.slane %v430, 0
        %v468 = vadd.f32 %v464, %v466
        %v469 = vpack.c.bf16 %v468, %v468
        %v470 = vld [vmem:[#allocation7] sm:$0xf]
        %v471 = vld [vmem:[#allocation7 + $0x4] sm:$0xf]
        %v472 = vld [vmem:[#allocation7 + $0x8] sm:$0xf]
        %v473 = vld [vmem:[#allocation7 + $0xc] sm:$0xf]
        %v478 = vunpack.c.l.b16 %v470
        %v479 = vunpack.c.l.b16 %v471
        %v480 = vunpack.c.l.b16 %v472
        %v481 = vunpack.c.l.b16 %v473
        %v482 = vpack.c.b16 %v479, %v478
        %v483 = vpack.c.b16 %v481, %v480
        %v487 = vsel %vm431, %v469, 0
        %489 = vmatpush.bf16.msra.mxu0 0
        %490 = vmatpush.bf16.msra.mxu0 0
        %491 = vmatpush.bf16.msra.mxu0 0
        %492 = vmatpush.bf16.msra.mxu0 0
        %493 = vmatpush.bf16.msra.mxu0 0
        %494 = vmatpush.bf16.msra.mxu0 0
        %495 = vmatpush.bf16.msra.mxu0 %v483
        %496 = vmatpush.bf16.msra.mxu0 %v482
        %497 = vmatmul.bf16.gmra.mxu0 %v487
        %v498 = vpop.f32.mrf.mxu0
        %v499 = vadd.f32 0.0, %v498
        %v500 = vpop.f32.mrf.mxu0
        %501 = vdwg.mxu0
        %v502 = vmul.f32 %v499, 0.25
        %v503 = vpack.c.bf16 %v502, %v502
        %v504 = vld [vmem:[#allocation8] sm:$0xf]
        %v505 = vld [vmem:[#allocation8 + $0x4] sm:$0xf]
        %v506 = vld [vmem:[#allocation8 + $0x8] sm:$0xf]
        %v507 = vld [vmem:[#allocation8 + $0xc] sm:$0xf]
        %v512 = vunpack.c.l.b16 %v504
        %v513 = vunpack.c.l.b16 %v505
        %v514 = vunpack.c.l.b16 %v506
        %v515 = vunpack.c.l.b16 %v507
        %v516 = vpack.c.b16 %v513, %v512
        %v517 = vpack.c.b16 %v515, %v514
        %520 = vmatpush.bf16.msra.mxu0 0
        %521 = vmatpush.bf16.msra.mxu0 0
        %522 = vmatpush.bf16.msra.mxu0 0
        %523 = vmatpush.bf16.msra.mxu0 0
        %524 = vmatpush.bf16.msra.mxu0 0
        %525 = vmatpush.bf16.msra.mxu0 0
        %526 = vmatpush.bf16.msra.mxu0 %v517
        %527 = vmatpush.bf16.msra.mxu0 %v516
        %528 = vmatmul.bf16.gmra.mxu0 %v487
        %v529 = vpop.f32.mrf.mxu0
        %v530 = vadd.f32 0.0, %v529
        %v531 = vpop.f32.mrf.mxu0
        %532 = vdwg.mxu0
        %v533 = vpack.c.bf16 %v530, %v530
        %v534 = vld [vmem:[#allocation10] sm:$0xf]
        %v535 = vld [vmem:[#allocation10 + $0x4] sm:$0xf]
        %v536 = vld [vmem:[#allocation10 + $0x8] sm:$0xf]
        %v537 = vld [vmem:[#allocation10 + $0xc] sm:$0xf]
        %v542 = vunpack.c.l.b16 %v534
        %v543 = vunpack.c.l.b16 %v535
        %v544 = vunpack.c.l.b16 %v536
        %v545 = vunpack.c.l.b16 %v537
        %v546 = vpack.c.b16 %v543, %v542
        %v547 = vpack.c.b16 %v545, %v544
        %550 = vmatpush.bf16.msra.mxu0 0
        %551 = vmatpush.bf16.msra.mxu0 0
        %552 = vmatpush.bf16.msra.mxu0 0
        %553 = vmatpush.bf16.msra.mxu0 0
        %554 = vmatpush.bf16.msra.mxu0 0
        %555 = vmatpush.bf16.msra.mxu0 0
        %556 = vmatpush.bf16.msra.mxu0 %v547
        %557 = vmatpush.bf16.msra.mxu0 %v546
        %558 = vmatmul.bf16.gmra.mxu0 %v487
        %v559 = vpop.f32.mrf.mxu0
        %v560 = vadd.f32 0.0, %v559
        %v561 = vpop.f32.mrf.mxu0
        %562 = vdwg.mxu0
        %v563 = vpack.c.bf16 %v560, %v560
        %vm564 = vcmask 125952
        %565 = vst.msk [vmem:[%s411] sm:$0xf] %vm564, %v503
        %566 = vst.msk [vmem:[%s418] sm:$0xf] %vm564, %v533
        %567 = vst.msk [vmem:[%s425] sm:$0xf] %vm564, %v563
        %569 = vrot.lane.b32.xlu0 %v503, 112
        %v570 = vpop.permute.xlu0 %569
        %s572 = scalar_lea.vmem %s411, 4 [#allocation11]
        %573 = vst.msk [vmem:[%s572] sm:$0xf] %vm564, %v570
        %575 = vrot.lane.b32.xlu0 %v533, 112
        %v576 = vpop.permute.xlu0 %575
        %s578 = scalar_lea.vmem %s418, 4 [#allocation12]
        %579 = vst.msk [vmem:[%s578] sm:$0xf] %vm564, %v576
        %581 = vrot.lane.b32.xlu0 %v563, 112
        %v582 = vpop.permute.xlu0 %581
        %s584 = scalar_lea.vmem %s425, 4 [#allocation14]
        %585 = vst.msk [vmem:[%s584] sm:$0xf] %vm564, %v582
        %s586 = sand.u32 %s186, 1
        %s587 = scalar_lea.sflag [#allocation4], %s586
        %s588 = sand.u32 %s186, 1
        %s589 = smul.addr %s588, 8
        %s590 = scalar_lea.vmem [#allocation11], %s589
        %s591 = sand.u32 %s31, 1
        %s592 = scalar_lea.sflag [#allocation13], %s591
        %s593 = sand.u32 %s214, 1
        %s594 = smul.addr %s593, 8
        %s595 = scalar_lea.vmem [#allocation12], %s594
        %s596 = sand.u32 %s31, 1
        %s597 = scalar_lea.sflag [#allocation13], %s596
        %s598 = sand.u32 %s242, 1
        %s599 = smul.addr %s598, 8
        %s600 = scalar_lea.vmem [#allocation14], %s599
        // Predicated region
        $region65: #{tpu_custom_call.1} parent=43 // pred_check
          %p601 = pneg %p196
        $region66: #{tpu_custom_call.1} parent=43 // pred_check_branch
          %603 = sbr.rel (%p601) target = $region68
        $region67: #{tpu_custom_call.1} parent=43 // pred_region
          %605 = vsyncadd %s587, 0
          %s606 = smul.addr %s35, 2
          %s607 = sadd.s32 %s36, %s606
          %s608 = smul.addr %s607, 4
          %s609 = scalar_lea.hbm %s6, %s608
          %s610 = sshll.u32 %s590, 4
          %s611 = int_to_ptr.vmem [resolvable:$true] %s610
          %s612 = sshll.u32 %s609, 4
          %s613 = int_to_ptr.hbm [resolvable:$true] %s612
          %618 = dma.vmem_to_hbm [thread:$0]  %s611, 128, %s613, %s587, 64, 64, 4
        $region68: #{tpu_custom_call.1} parent=43 // pred_fallthru
          _
        // Predicated region
        $region69: #{tpu_custom_call.1} parent=43 // pred_check
          %p619 = pneg %p224
        $region70: #{tpu_custom_call.1} parent=43 // pred_check_branch
          %621 = sbr.rel (%p619) target = $region72
        $region71: #{tpu_custom_call.1} parent=43 // pred_region
          %623 = vsyncadd %s592, 0
          %s624 = smul.addr %s35, 2
          %s625 = sadd.s32 %s36, %s624
          %s626 = smul.addr %s625, 4
          %s627 = scalar_lea.hbm %s7, %s626
          %s628 = sshll.u32 %s595, 4
          %s629 = int_to_ptr.vmem [resolvable:$true] %s628
          %s630 = sshll.u32 %s627, 4
          %s631 = int_to_ptr.hbm [resolvable:$true] %s630
          %636 = dma.vmem_to_hbm [thread:$0]  %s629, 128, %s631, %s592, 64, 64, 4
        $region72: #{tpu_custom_call.1} parent=43 // pred_fallthru
          _
        // Predicated region
        $region73: #{tpu_custom_call.1} parent=43 // pred_check
          %p637 = pneg %p252
        $region74: #{tpu_custom_call.1} parent=43 // pred_check_branch
          %639 = sbr.rel (%p637) target = $region76
        $region75: #{tpu_custom_call.1} parent=43 // pred_region
          %641 = vsyncadd %s597, 0
          %s642 = smul.addr %s35, 2
          %s643 = sadd.s32 %s36, %s642
          %s644 = smul.addr %s643, 4
          %s645 = scalar_lea.hbm %s8, %s644
          %s646 = sshll.u32 %s600, 4
          %s647 = int_to_ptr.vmem [resolvable:$true] %s646
          %s648 = sshll.u32 %s645, 4
          %s649 = int_to_ptr.hbm [resolvable:$true] %s648
          %654 = dma.vmem_to_hbm [thread:$0]  %s647, 128, %s649, %s597, 64, 64, 4
        $region76: #{tpu_custom_call.1} parent=43 // pred_fallthru
          _
      $region44: #{tpu_custom_call.1} parent=5 // pred_fallthru
        _
      %p655 = scmp.le.s32.totalorder 2, %s26
      // Predicated region
      $region77: #{tpu_custom_call.1} parent=5 // pred_check
        %p656 = pneg %p655
      $region78: #{tpu_custom_call.1} parent=5 // pred_check_branch
        %658 = sbr.rel (%p656) target = $region80
      $region79: #{tpu_custom_call.1} parent=5 // pred_region
        %s659 = ssub.s32 %s26, 2
        // Predicated region
        $region81: #{tpu_custom_call.1} parent=79 // pred_check
          %p660 = pneg %p202
        $region82: #{tpu_custom_call.1} parent=79 // pred_check_branch
          %662 = sbr.rel (%p660) target = $region84
        $region83: #{tpu_custom_call.1} parent=79 // pred_region
          %s663 = sand.u32 %s187, 1
          %s664 = scalar_lea.sflag [#allocation4], %s663
          %s665 = sand.u32 %s187, 1
          %s666 = smul.addr %s665, 8
          %s667 = scalar_lea.vmem [#allocation11], %s666
          %669 = dma.done %s664, 128
        $region84: #{tpu_custom_call.1} parent=79 // pred_fallthru
          _
        // Predicated region
        $region85: #{tpu_custom_call.1} parent=79 // pred_check
          %p670 = pneg %p230
        $region86: #{tpu_custom_call.1} parent=79 // pred_check_branch
          %672 = sbr.rel (%p670) target = $region88
        $region87: #{tpu_custom_call.1} parent=79 // pred_region
          %s673 = sand.u32 %s32, 1
          %s674 = scalar_lea.sflag [#allocation13], %s673
          %s675 = sand.u32 %s215, 1
          %s676 = smul.addr %s675, 8
          %s677 = scalar_lea.vmem [#allocation12], %s676
          %679 = dma.done %s674, 128
        $region88: #{tpu_custom_call.1} parent=79 // pred_fallthru
          _
        // Predicated region
        $region89: #{tpu_custom_call.1} parent=79 // pred_check
          %p680 = pneg %p258
        $region90: #{tpu_custom_call.1} parent=79 // pred_check_branch
          %682 = sbr.rel (%p680) target = $region92
        $region91: #{tpu_custom_call.1} parent=79 // pred_region
          %s683 = sand.u32 %s32, 1
          %s684 = scalar_lea.sflag [#allocation13], %s683
          %s685 = sand.u32 %s243, 1
          %s686 = smul.addr %s685, 8
          %s687 = scalar_lea.vmem [#allocation14], %s686
          %689 = dma.done %s684, 128
        $region92: #{tpu_custom_call.1} parent=79 // pred_fallthru
          _
      $region80: #{tpu_custom_call.1} parent=5 // pred_fallthru
        _
    $region6: #{tpu_custom_call.1} parent=1 // loop_footer
      %s30 = sadd.s32 1, %s26
    $region7: #{tpu_custom_call.1} parent=1 // loop_footer_branch
      %25 = sbr.rel target = $region3
    $region8: #{tpu_custom_call.1} parent=1 // loop_exit
      _
    %690 = vsyncpa [#allocation3], 1
    %s691 = scalar_lea.sflag [#allocation3], 1
    %692 = vsyncpa %s691, 1
    %693 = vsyncpa [#allocation6], 1
    %694 = vsyncpa [#allocation9], 1
    %695 = vsyncpa [#allocation4], 1
    %s696 = scalar_lea.sflag [#allocation4], 1
    %697 = vsyncpa %s696, 1
    %698 = vsyncpa [#allocation13], 1
    %s699 = scalar_lea.sflag [#allocation13], 1
    %700 = vsyncpa %s699, 1

</llo_original>
